<compile_context>
chip_gen: v5e
topology: v5e:2x2
jax: 0.10.0
libtpu: 0.0.40
codegen_flags: <defaults>
</compile_context>

<pallas_src>
import math

import jax
import jax.numpy as jnp
from jax.experimental import pallas as pl
from jax.experimental.pallas import tpu as pltpu


def _round_up(x, m):
    return ((x + m - 1) // m) * m


def _cdiv(a, b):
    return (a + b - 1) // b


def _layernorm(x, g, b, eps=1e-5):
    # PyTorch nn.LayerNorm over last dim (biased variance, eps=1e-5), f32 math.
    mu = jnp.mean(x, axis=-1, keepdims=True)
    var = jnp.mean(jnp.square(x - mu), axis=-1, keepdims=True)
    return (x - mu) * jax.lax.rsqrt(var + eps) * g + b


def _gelu_tanh(x):
    # tanh-approximate GELU (<= ~1e-3 abs deviation from torch's exact erf
    # GELU); jnp.tanh runs on the EUP slot, unlike a VALU erf polynomial.
    c = math.sqrt(2.0 / math.pi)
    return 0.5 * x * (1.0 + jnp.tanh(c * (x + 0.044715 * x * x * x)))


def _make_kernel(num_head, head_dim, latent_dim, block_b, s_pad):
    D = latent_dim
    S = s_pad
    rows = block_b * S
    bf16 = jnp.bfloat16

    def kernel(x_ref, pos_ref, w_in_ref,
               qkv_w_ref, qkv_b_ref, out_w_ref, out_b_ref,
               ln1_g_ref, ln1_b_ref, ln2_g_ref, ln2_b_ref,
               w1_ref, b1_ref, w2_ref, b2_ref,
               lnf_g_ref, lnf_b_ref, w_out_ref, b_out_ref,
               o_ref, h_ref, ctx_ref):
        layer = pl.program_id(1)
        last_layer = pl.num_programs(1) - 1

        # ---- first layer step: input projection + positional embedding ------
        @pl.when(layer == 0)
        def _():
            h0 = jnp.dot(x_ref[...].astype(bf16), w_in_ref[...],
                         preferred_element_type=jnp.float32)
            # pos_ref already includes the input-layer bias; broadcast over the
            # block_b sequences of this step.
            h_ref[...] = h0 + jnp.tile(pos_ref[...], (block_b, 1))

        # additive causal bias (j > i masked), tiny, rebuilt per step
        row_ids = jax.lax.broadcasted_iota(jnp.int32, (S, S), 0)
        col_ids = jax.lax.broadcasted_iota(jnp.int32, (S, S), 1)
        mask_add = jnp.where(col_ids > row_ids, -1e30, 0.0).astype(jnp.float32)

        h = h_ref[...]                                        # (rows, D) f32

        # -------- attention sub-block: x = ln1(x); x = x + attn(x, x, x) -----
        hn = _layernorm(h, ln1_g_ref[0], ln1_b_ref[0])
        # fused QKV projection: (rows, D) x (D, 3D); q scale already folded in
        qkv = jnp.dot(hn.astype(bf16), qkv_w_ref[0],
                      preferred_element_type=jnp.float32) + qkv_b_ref[0]

        for hh in range(num_head):                 # batched over block_b seqs
            c0 = hh * head_dim
            q = qkv[:, c0:c0 + head_dim].reshape(block_b, S, head_dim).astype(bf16)
            k = qkv[:, D + c0:D + c0 + head_dim].reshape(block_b, S, head_dim).astype(bf16)
            v = qkv[:, 2 * D + c0:2 * D + c0 + head_dim].reshape(block_b, S, head_dim).astype(bf16)
            s = jnp.einsum("bqd,bkd->bqk", q, k,
                           preferred_element_type=jnp.float32)
            s = s + mask_add[None]
            s = s - jnp.max(s, axis=-1, keepdims=True)
            p = jnp.exp(s)
            p = p * pl.reciprocal(jnp.sum(p, axis=-1, keepdims=True), approx=True)
            ctx_h = jnp.einsum("bqk,bkd->bqd", p.astype(bf16), v,
                               preferred_element_type=jnp.float32)
            # store this head's context straight into the scratch slab
            ctx_ref[:, c0:c0 + head_dim] = ctx_h.reshape(rows, head_dim)

        attn_out = jnp.dot(ctx_ref[...].astype(bf16), out_w_ref[0],
                           preferred_element_type=jnp.float32) + out_b_ref[0]
        h = hn + attn_out          # residual from LN output (matches reference)

        # -------- MLP sub-block: x = ln2(x); x = x + mlp(x) -------------------
        hn2 = _layernorm(h, ln2_g_ref[0], ln2_b_ref[0])
        m = jnp.dot(hn2.astype(bf16), w1_ref[0],
                    preferred_element_type=jnp.float32) + b1_ref[0]
        m = _gelu_tanh(m)
        m = jnp.dot(m.astype(bf16), w2_ref[0],
                    preferred_element_type=jnp.float32) + b2_ref[0]
        h_ref[...] = hn2 + m       # dropout layers are identity (inference)

        # ---- last layer step: final LayerNorm + lane-dense output projection -
        @pl.when(layer == last_layer)
        def _():
            hf = _layernorm(h_ref[...], lnf_g_ref[...], lnf_b_ref[...])
            o_ref[...] = jnp.dot(hf.astype(bf16), w_out_ref[...],
                                 preferred_element_type=jnp.float32) + b_out_ref[...]

    return kernel


def init_params(key, input_dim, output_dim, seq_len, latent_dim, num_head, num_layer):
    """Raw (PyTorch-layout) parameters of Latent_Model_Transformer."""
    D, L = latent_dim, num_layer
    ks = jax.random.split(key, 13)

    def nrm(k, shape, s=0.02):
        return jax.random.normal(k, shape, dtype=jnp.float32) * s

    return dict(
        w_in=nrm(ks[0], (D, input_dim)),           # nn.Linear(input_dim, D).weight
        b_in=nrm(ks[1], (D,), 0.01),
        pos=nrm(ks[2], (seq_len, D)),              # nn.Embedding(seq_len, D).weight
        ln1_g=jnp.ones((L, D), jnp.float32),
        ln1_b=jnp.zeros((L, D), jnp.float32),
        qkv_w=nrm(ks[3], (L, 3 * D, D)),           # MHA in_proj_weight (stacked)
        qkv_b=nrm(ks[4], (L, 3 * D), 0.01),
        out_w=nrm(ks[5], (L, D, D)),               # MHA out_proj.weight
        out_b=nrm(ks[6], (L, D), 0.01),
        ln2_g=jnp.ones((L, D), jnp.float32),
        ln2_b=jnp.zeros((L, D), jnp.float32),
        w1=nrm(ks[7], (L, 4 * D, D)),              # mlp Linear(D, 4D).weight
        b1=nrm(ks[8], (L, 4 * D), 0.01),
        w2=nrm(ks[9], (L, D, 4 * D)),              # mlp Linear(4D, D).weight
        b2=nrm(ks[10], (L, D), 0.01),
        lnf_g=jnp.ones((D,), jnp.float32),
        lnf_b=jnp.zeros((D,), jnp.float32),
        w_out=nrm(ks[11], (output_dim, D)),        # output_layer.weight
        b_out=nrm(ks[12], (output_dim,), 0.01),
    )


def prepare_params(params, *, num_head):
    """One-time host-side weight prep: (K, N) layouts, lane padding, bf16 casts,
    q-scale folding.  Call once and reuse across forward calls."""
    f32, bf16 = jnp.float32, jnp.bfloat16
    D, Din = params["w_in"].shape
    Dout = params["w_out"].shape[0]
    S = params["pos"].shape[0]
    L = params["qkv_w"].shape[0]
    assert D % num_head == 0
    head_dim = D // num_head
    scale = 1.0 / math.sqrt(head_dim)

    s_pad = _round_up(S, 8)
    din_pad = _round_up(Din, 128)
    dout_pad = _round_up(Dout, 128)

    # fold 1/sqrt(head_dim) into the Q columns of the fused in-projection
    qscale = jnp.concatenate([jnp.full((D,), scale, f32), jnp.ones((2 * D,), f32)])

    prep = dict(
        pos=jnp.pad(params["pos"] + params["b_in"][None, :],
                    ((0, s_pad - S), (0, 0))).astype(f32),
        w_in=jnp.pad(params["w_in"].T, ((0, din_pad - Din), (0, 0))).astype(bf16),
        qkv_w=(jnp.transpose(params["qkv_w"], (0, 2, 1)) * qscale[None, None, :]).astype(bf16),
        qkv_b=(params["qkv_b"] * qscale[None, :]).reshape(L, 1, 3 * D).astype(f32),
        out_w=jnp.transpose(params["out_w"], (0, 2, 1)).astype(bf16),
        out_b=params["out_b"].reshape(L, 1, D).astype(f32),
        ln1_g=params["ln1_g"].reshape(L, 1, D).astype(f32),
        ln1_b=params["ln1_b"].reshape(L, 1, D).astype(f32),
        ln2_g=params["ln2_g"].reshape(L, 1, D).astype(f32),
        ln2_b=params["ln2_b"].reshape(L, 1, D).astype(f32),
        w1=jnp.transpose(params["w1"], (0, 2, 1)).astype(bf16),
        b1=params["b1"].reshape(L, 1, 4 * D).astype(f32),
        w2=jnp.transpose(params["w2"], (0, 2, 1)).astype(bf16),
        b2=params["b2"].reshape(L, 1, D).astype(f32),
        lnf_g=params["lnf_g"].reshape(1, D).astype(f32),
        lnf_b=params["lnf_b"].reshape(1, D).astype(f32),
        w_out=jnp.pad(params["w_out"].T, ((0, 0), (0, dout_pad - Dout))).astype(bf16),
        b_out=jnp.pad(params["b_out"], (0, dout_pad - Dout)).reshape(1, dout_pad).astype(f32),
    )
    meta = dict(D=D, Din=Din, Dout=Dout, S=S, s_pad=s_pad, din_pad=din_pad,
                dout_pad=dout_pad, num_head=num_head, head_dim=head_dim, num_layer=L)
    return prep, meta


_WEIGHT_ORDER = ["pos", "w_in", "qkv_w", "qkv_b", "out_w", "out_b",
                 "ln1_g", "ln1_b", "ln2_g", "ln2_b",
                 "w1", "b1", "w2", "b2",
                 "lnf_g", "lnf_b", "w_out", "b_out"]
_PER_LAYER = {"qkv_w", "qkv_b", "out_w", "out_b", "ln1_g", "ln1_b",
              "ln2_g", "ln2_b", "w1", "b1", "w2", "b2"}


def latent_model_transformer_forward(x, prep, meta, *, block_b=None):
    B, S, Din = x.shape
    assert S == meta["S"] and Din == meta["Din"]
    D, Dout, L = meta["D"], meta["Dout"], meta["num_layer"]
    s_pad, din_pad, dout_pad = meta["s_pad"], meta["din_pad"], meta["dout_pad"]
    num_head, head_dim = meta["num_head"], meta["head_dim"]

    # ---- batch tiling: target >=~256 rows/step, but keep >=2 batch grid steps
    # when possible so v7x's second TensorCore gets work.
    if block_b is None:
        block_b = max(1, min(B, max(1, 256 // s_pad)))
        if _cdiv(B, block_b) < 2 and block_b > 1:
            block_b = (block_b + 1) // 2
    b_pad = _round_up(B, block_b)
    rows = block_b * s_pad            # multiple of 8 (s_pad is)
    nb = b_pad // block_b

    # ---- per-call input padding / flattening (weights are prepped once) ------
    x2 = jnp.pad(x, ((0, b_pad - B), (0, s_pad - S), (0, din_pad - Din)))
    x2 = x2.astype(jnp.float32).reshape(b_pad * s_pad, din_pad)

    def _spec(name, arr):
        nd = arr.ndim
        if name in _PER_LAYER:
            # streamed along the layer grid axis; double-buffered by Pallas so
            # next layer's weight DMA overlaps this layer's compute.
            return pl.BlockSpec((1,) + arr.shape[1:],
                                lambda i, l, nd=nd: (l,) + (0,) * (nd - 1))
        # grid-invariant (whole-array) weights.
        return pl.BlockSpec(arr.shape, lambda i, l, nd=nd: (0,) * nd)

    in_specs = [pl.BlockSpec((rows, din_pad), lambda i, l: (i, 0))]
    weights = []
    for name in _WEIGHT_ORDER:
        arr = prep[name]
        weights.append(arr)
        in_specs.append(_spec(name, arr))
    out_specs = pl.BlockSpec((rows, dout_pad), lambda i, l: (i, 0))

    # ---- VMEM budget derived from actual buffer sizes (x2 for double buffers),
    # capped below the generation's physical VMEM.
    def _nbytes(a):
        return a.size * a.dtype.itemsize
    est = 2 * rows * din_pad * 4 + 2 * rows * dout_pad * 4       # x / out blocks
    est += 2 * rows * D * 4                                      # h / ctx scratch
    for name in _WEIGHT_ORDER:
        a = prep[name]
        est += (2 * _nbytes(a) // L) if name in _PER_LAYER else 2 * _nbytes(a)
    est += rows * 16 * D * 4 + 4 * block_b * s_pad * s_pad * 4   # temporaries
    try:
        vmem_cap = pltpu.get_tpu_info().vmem_capacity_bytes
    except Exception:
        vmem_cap = 64 * 1024 * 1024                              # v7x worst case
    vmem_limit = int(min(int(0.8 * vmem_cap), max(32 << 20, 2 * est + (4 << 20))))

    kernel = _make_kernel(num_head, head_dim, D, block_b, s_pad)

    out = pl.pallas_call(
        kernel,
        grid=(nb, L),
        in_specs=in_specs,
        out_specs=out_specs,
        out_shape=jax.ShapeDtypeStruct((b_pad * s_pad, dout_pad), jnp.float32),
        scratch_shapes=[pltpu.VMEM((rows, D), jnp.float32),      # residual stream
                        pltpu.VMEM((rows, D), jnp.float32)],     # head contexts
        compiler_params=pltpu.CompilerParams(
            dimension_semantics=("parallel", "arbitrary"),
            vmem_limit_bytes=vmem_limit,
        ),
    )(x2, *weights)

    return out.reshape(b_pad, s_pad, dout_pad)[:B, :S, :Dout]


if __name__ == "__main__":
    # Small shapes consistent with
    # Latent_Model_Transformer(input_dim, output_dim, seq_len, latent_dim, num_head, num_layer)
    B, S = 2, 8
    input_dim, output_dim = 10, 10
    latent_dim, num_head, num_layer = 32, 4, 3

    key = jax.random.PRNGKey(0)
    kx, kp = jax.random.split(key)
    x = jax.random.normal(kx, (B, S, input_dim), dtype=jnp.float32)
    params = init_params(kp, input_dim, output_dim, S, latent_dim, num_head, num_layer)

    # one-time weight preparation (padding / transposes / bf16 casts / scale fold)
    prep, meta = prepare_params(params, num_head=num_head)

    out = latent_model_transformer_forward(x, prep, meta)
    out = jax.block_until_ready(out)

    assert out.shape == (B, S, output_dim), out.shape
    assert bool(jnp.all(jnp.isfinite(out)))
    print("KERNEL_OK")
</pallas_src>

<mosaic_0001>
module attributes {stable_mosaic.version = 11 : i64} {
  func.func @kernel(%arg0: i32, %arg1: i32, %arg2: memref<8x128xf32, #tpu.memory_space<vmem>>, %arg3: memref<8x32xf32, #tpu.memory_space<vmem>>, %arg4: memref<128x32xbf16, #tpu.memory_space<vmem>>, %arg5: memref<1x32x96xbf16, #tpu.memory_space<vmem>>, %arg6: memref<1x1x96xf32, #tpu.memory_space<vmem>>, %arg7: memref<1x32x32xbf16, #tpu.memory_space<vmem>>, %arg8: memref<1x1x32xf32, #tpu.memory_space<vmem>>, %arg9: memref<1x1x32xf32, #tpu.memory_space<vmem>>, %arg10: memref<1x1x32xf32, #tpu.memory_space<vmem>>, %arg11: memref<1x1x32xf32, #tpu.memory_space<vmem>>, %arg12: memref<1x1x32xf32, #tpu.memory_space<vmem>>, %arg13: memref<1x32x128xbf16, #tpu.memory_space<vmem>>, %arg14: memref<1x1x128xf32, #tpu.memory_space<vmem>>, %arg15: memref<1x128x32xbf16, #tpu.memory_space<vmem>>, %arg16: memref<1x1x32xf32, #tpu.memory_space<vmem>>, %arg17: memref<1x32xf32, #tpu.memory_space<vmem>>, %arg18: memref<1x32xf32, #tpu.memory_space<vmem>>, %arg19: memref<32x128xbf16, #tpu.memory_space<vmem>>, %arg20: memref<1x128xf32, #tpu.memory_space<vmem>>, %arg21: memref<8x128xf32, #tpu.memory_space<vmem>>, %arg22: memref<8x32xf32, #tpu.memory_space<vmem>>, %arg23: memref<8x32xf32, #tpu.memory_space<vmem>>) attributes {dimension_semantics = [#tpu.dimension_semantics<parallel>, #tpu.dimension_semantics<arbitrary>], iteration_bounds = array<i64: 2, 3>, scalar_prefetch = 0 : i64, scratch_operands = 2 : i64, tpu.core_type = #tpu.core_type<tc>, window_params = [{transform_indices = @transform_0, window_bounds = array<i64: 8, 128>}, {pipeline_mode = #tpu.pipeline_mode<synchronous>, transform_indices = @transform_1, window_bounds = array<i64: 8, 32>}, {pipeline_mode = #tpu.pipeline_mode<synchronous>, transform_indices = @transform_2, window_bounds = array<i64: 128, 32>}, {transform_indices = @transform_3, window_bounds = array<i64: 1, 32, 96>}, {transform_indices = @transform_4, window_bounds = array<i64: 1, 1, 96>}, {transform_indices = @transform_5, window_bounds = array<i64: 1, 32, 32>}, {transform_indices = @transform_6, window_bounds = array<i64: 1, 1, 32>}, {transform_indices = @transform_7, window_bounds = array<i64: 1, 1, 32>}, {transform_indices = @transform_8, window_bounds = array<i64: 1, 1, 32>}, {transform_indices = @transform_9, window_bounds = array<i64: 1, 1, 32>}, {transform_indices = @transform_10, window_bounds = array<i64: 1, 1, 32>}, {transform_indices = @transform_11, window_bounds = array<i64: 1, 32, 128>}, {transform_indices = @transform_12, window_bounds = array<i64: 1, 1, 128>}, {transform_indices = @transform_13, window_bounds = array<i64: 1, 128, 32>}, {transform_indices = @transform_14, window_bounds = array<i64: 1, 1, 32>}, {pipeline_mode = #tpu.pipeline_mode<synchronous>, transform_indices = @transform_15, window_bounds = array<i64: 1, 32>}, {pipeline_mode = #tpu.pipeline_mode<synchronous>, transform_indices = @transform_16, window_bounds = array<i64: 1, 32>}, {pipeline_mode = #tpu.pipeline_mode<synchronous>, transform_indices = @transform_17, window_bounds = array<i64: 32, 128>}, {pipeline_mode = #tpu.pipeline_mode<synchronous>, transform_indices = @transform_18, window_bounds = array<i64: 1, 128>}, {transform_indices = @transform_19, window_bounds = array<i64: 8, 128>}]} {
    %c0_i32 = arith.constant 0 : i32
    %0 = arith.cmpi eq, %arg1, %c0_i32 : i32
    %1 = arith.extui %0 : i1 to i32
    %c0_i32_0 = arith.constant 0 : i32
    %2 = arith.cmpi ne, %1, %c0_i32_0 : i32
    scf.if %2 {
      %c0_83 = arith.constant 0 : index
      %c0_84 = arith.constant 0 : index
      %218 = vector.load %arg2[%c0_83, %c0_84] : memref<8x128xf32, #tpu.memory_space<vmem>>, vector<8x128xf32>
      %219 = arith.truncf %218 : vector<8x128xf32> to vector<8x128xbf16>
      %c0_85 = arith.constant 0 : index
      %c0_86 = arith.constant 0 : index
      %220 = vector.load %arg4[%c0_85, %c0_86] : memref<128x32xbf16, #tpu.memory_space<vmem>>, vector<128x32xbf16>
      %cst_87 = arith.constant dense<0.000000e+00> : vector<8x32xf32>
      %221 = tpu.matmul %219, %220, %cst_87 {dimension_numbers = #tpu.dot_dimension_numbers<[1], [0], [0], [1], [0, 0, 1, 1], [], []>} : vector<8x128xbf16>, vector<128x32xbf16>, vector<8x32xf32> -> vector<8x32xf32>
      %c0_88 = arith.constant 0 : index
      %c0_89 = arith.constant 0 : index
      %222 = vector.load %arg3[%c0_88, %c0_89] : memref<8x32xf32, #tpu.memory_space<vmem>>, vector<8x32xf32>
      %223 = arith.addf %221, %222 : vector<8x32xf32>
      %c0_90 = arith.constant 0 : index
      %c0_91 = arith.constant 0 : index
      %224 = vector.load %arg22[%c0_90, %c0_91] : memref<8x32xf32, #tpu.memory_space<vmem>>, vector<8x32xf32>
      tpu.vector_store %arg22[%c0_90, %c0_91], %223 {strides = array<i32>} : memref<8x32xf32, #tpu.memory_space<vmem>>, vector<8x32xf32>,
    } else {
    }
    %3 = tpu.iota {dimensions = array<i32: 0>} : vector<8x8xi32>
    %4 = tpu.iota {dimensions = array<i32: 1>} : vector<8x8xi32>
    %5 = arith.cmpi sgt, %4, %3 : vector<8x8xi32>
    %cst = arith.constant -1.000000e+30 : f32
    %cst_1 = arith.constant 0.000000e+00 : f32
    %6 = vector.broadcast %cst : f32 to vector<8x8xf32>
    %7 = vector.broadcast %cst_1 : f32 to vector<8x8xf32>
    %8 = arith.select %5, %6, %7 : vector<8x8xi1>, vector<8x8xf32>
    %c0 = arith.constant 0 : index
    %c0_2 = arith.constant 0 : index
    %9 = vector.load %arg22[%c0, %c0_2] : memref<8x32xf32, #tpu.memory_space<vmem>>, vector<8x32xf32>
    %c0_3 = arith.constant 0 : index
    %c0_4 = arith.constant 0 : index
    %c0_5 = arith.constant 0 : index
    %10 = vector.load %arg9[%c0_3, %c0_4, %c0_5] : memref<1x1x32xf32, #tpu.memory_space<vmem>>, vector<1x1x32xf32>
    %11 = vector.shape_cast %10 : vector<1x1x32xf32> to vector<1x32xf32>
    %c0_6 = arith.constant 0 : index
    %c0_7 = arith.constant 0 : index
    %c0_8 = arith.constant 0 : index
    %12 = vector.load %arg10[%c0_6, %c0_7, %c0_8] : memref<1x1x32xf32, #tpu.memory_space<vmem>>, vector<1x1x32xf32>
    %13 = vector.shape_cast %12 : vector<1x1x32xf32> to vector<1x32xf32>
    %cst_9 = arith.constant dense<0.000000e+00> : vector<8xf32>
    %14 = vector.multi_reduction <add>, %9, %cst_9 [1] : vector<8x32xf32> to vector<8xf32>
    %15 = vector.shape_cast %14 : vector<8xf32> to vector<8x1xf32>
    %cst_10 = arith.constant 3.200000e+01 : f32
    %16 = vector.broadcast %cst_10 : f32 to vector<8x1xf32>
    %17 = arith.divf %15, %16 : vector<8x1xf32>
    %18 = vector.broadcast %17 : vector<8x1xf32> to vector<8x32xf32>
    %19 = arith.subf %9, %18 : vector<8x32xf32>
    %20 = arith.mulf %19, %19 : vector<8x32xf32>
    %cst_11 = arith.constant dense<0.000000e+00> : vector<8xf32>
    %21 = vector.multi_reduction <add>, %20, %cst_11 [1] : vector<8x32xf32> to vector<8xf32>
    %22 = vector.shape_cast %21 : vector<8xf32> to vector<8x1xf32>
    %cst_12 = arith.constant 3.200000e+01 : f32
    %23 = vector.broadcast %cst_12 : f32 to vector<8x1xf32>
    %24 = arith.divf %22, %23 : vector<8x1xf32>
    %25 = vector.broadcast %17 : vector<8x1xf32> to vector<8x32xf32>
    %26 = arith.subf %9, %25 : vector<8x32xf32>
    %cst_13 = arith.constant 9.99999974E-6 : f32
    %27 = vector.broadcast %cst_13 : f32 to vector<8x1xf32>
    %28 = arith.addf %24, %27 : vector<8x1xf32>
    %29 = math.rsqrt %28 : vector<8x1xf32>
    %30 = vector.broadcast %29 : vector<8x1xf32> to vector<8x32xf32>
    %31 = arith.mulf %26, %30 : vector<8x32xf32>
    %32 = vector.broadcast %11 : vector<1x32xf32> to vector<8x32xf32>
    %33 = arith.mulf %31, %32 : vector<8x32xf32>
    %34 = vector.broadcast %13 : vector<1x32xf32> to vector<8x32xf32>
    %35 = arith.addf %33, %34 : vector<8x32xf32>
    %36 = arith.truncf %35 : vector<8x32xf32> to vector<8x32xbf16>
    %c0_14 = arith.constant 0 : index
    %c0_15 = arith.constant 0 : index
    %c0_16 = arith.constant 0 : index
    %37 = vector.load %arg5[%c0_14, %c0_15, %c0_16] : memref<1x32x96xbf16, #tpu.memory_space<vmem>>, vector<1x32x96xbf16>
    %38 = vector.shape_cast %37 : vector<1x32x96xbf16> to vector<32x96xbf16>
    %cst_17 = arith.constant dense<0.000000e+00> : vector<8x96xf32>
    %39 = tpu.matmul %36, %38, %cst_17 {dimension_numbers = #tpu.dot_dimension_numbers<[1], [0], [0], [1], [0, 0, 1, 1], [], []>} : vector<8x32xbf16>, vector<32x96xbf16>, vector<8x96xf32> -> vector<8x96xf32>
    %c0_18 = arith.constant 0 : index
    %c0_19 = arith.constant 0 : index
    %c0_20 = arith.constant 0 : index
    %40 = vector.load %arg6[%c0_18, %c0_19, %c0_20] : memref<1x1x96xf32, #tpu.memory_space<vmem>>, vector<1x1x96xf32>
    %41 = vector.shape_cast %40 : vector<1x1x96xf32> to vector<1x96xf32>
    %42 = vector.broadcast %41 : vector<1x96xf32> to vector<8x96xf32>
    %43 = arith.addf %39, %42 : vector<8x96xf32>
    %44 = vector.extract_strided_slice %43 {offsets = [0, 0], sizes = [8, 8], strides = [1, 1]} : vector<8x96xf32> to vector<8x8xf32>
    %45 = vector.shape_cast %44 : vector<8x8xf32> to vector<1x8x8xf32>
    %46 = arith.truncf %45 : vector<1x8x8xf32> to vector<1x8x8xbf16>
    %47 = vector.extract_strided_slice %43 {offsets = [0, 32], sizes = [8, 8], strides = [1, 1]} : vector<8x96xf32> to vector<8x8xf32>
    %48 = vector.shape_cast %47 : vector<8x8xf32> to vector<1x8x8xf32>
    %49 = arith.truncf %48 : vector<1x8x8xf32> to vector<1x8x8xbf16>
    %50 = vector.extract_strided_slice %43 {offsets = [0, 64], sizes = [8, 8], strides = [1, 1]} : vector<8x96xf32> to vector<8x8xf32>
    %51 = vector.shape_cast %50 : vector<8x8xf32> to vector<1x8x8xf32>
    %52 = arith.truncf %51 : vector<1x8x8xf32> to vector<1x8x8xbf16>
    "tpu.trace_start"() <{level = 10 : i32, message = "bqd,bkd->bqk"}> : () -> ()
    %cst_21 = arith.constant dense<0.000000e+00> : vector<1x8x8xf32>
    %53 = tpu.matmul %46, %49, %cst_21 {dimension_numbers = #tpu.dot_dimension_numbers<[2], [2], [1], [1], [0, 0, 0, 1, 1, 1], [0], [0]>} : vector<1x8x8xbf16>, vector<1x8x8xbf16>, vector<1x8x8xf32> -> vector<1x8x8xf32>
    "tpu.trace_stop"() : () -> ()
    %54 = vector.shape_cast %8 : vector<8x8xf32> to vector<1x8x8xf32>
    %55 = arith.addf %53, %54 : vector<1x8x8xf32>
    %cst_22 = arith.constant dense<0xFF800000> : vector<1x8xf32>
    %56 = vector.multi_reduction <maximumf>, %55, %cst_22 [2] : vector<1x8x8xf32> to vector<1x8xf32>
    %57 = vector.shape_cast %56 : vector<1x8xf32> to vector<1x8x1xf32>
    %58 = vector.broadcast %57 : vector<1x8x1xf32> to vector<1x8x8xf32>
    %59 = arith.subf %55, %58 : vector<1x8x8xf32>
    %60 = math.exp %59 : vector<1x8x8xf32>
    %cst_23 = arith.constant dense<0.000000e+00> : vector<1x8xf32>
    %61 = vector.multi_reduction <add>, %60, %cst_23 [2] : vector<1x8x8xf32> to vector<1x8xf32>
    %62 = vector.shape_cast %61 : vector<1x8xf32> to vector<1x8x1xf32>
    %63 = tpu.reciprocal %62 {approx = true} : vector<1x8x1xf32> -> vector<1x8x1xf32>
    %64 = vector.broadcast %63 : vector<1x8x1xf32> to vector<1x8x8xf32>
    %65 = arith.mulf %60, %64 : vector<1x8x8xf32>
    %66 = arith.truncf %65 : vector<1x8x8xf32> to vector<1x8x8xbf16>
    "tpu.trace_start"() <{level = 10 : i32, message = "bqk,bkd->bqd"}> : () -> ()
    %cst_24 = arith.constant dense<0.000000e+00> : vector<1x8x8xf32>
    %67 = tpu.matmul %66, %52, %cst_24 {dimension_numbers = #tpu.dot_dimension_numbers<[2], [1], [1], [2], [0, 0, 0, 1, 1, 2], [0], [0]>} : vector<1x8x8xbf16>, vector<1x8x8xbf16>, vector<1x8x8xf32> -> vector<1x8x8xf32>
    "tpu.trace_stop"() : () -> ()
    %68 = vector.shape_cast %67 : vector<1x8x8xf32> to vector<8x8xf32>
    %c0_25 = arith.constant 0 : index
    %c0_26 = arith.constant 0 : index
    %69 = vector.load %arg23[%c0_25, %c0_26] : memref<8x32xf32, #tpu.memory_space<vmem>>, vector<8x8xf32>
    tpu.vector_store %arg23[%c0_25, %c0_26], %68 {strides = array<i32>} : memref<8x32xf32, #tpu.memory_space<vmem>>, vector<8x8xf32>,
    %70 = vector.extract_strided_slice %43 {offsets = [0, 8], sizes = [8, 8], strides = [1, 1]} : vector<8x96xf32> to vector<8x8xf32>
    %71 = vector.shape_cast %70 : vector<8x8xf32> to vector<1x8x8xf32>
    %72 = arith.truncf %71 : vector<1x8x8xf32> to vector<1x8x8xbf16>
    %73 = vector.extract_strided_slice %43 {offsets = [0, 40], sizes = [8, 8], strides = [1, 1]} : vector<8x96xf32> to vector<8x8xf32>
    %74 = vector.shape_cast %73 : vector<8x8xf32> to vector<1x8x8xf32>
    %75 = arith.truncf %74 : vector<1x8x8xf32> to vector<1x8x8xbf16>
    %76 = vector.extract_strided_slice %43 {offsets = [0, 72], sizes = [8, 8], strides = [1, 1]} : vector<8x96xf32> to vector<8x8xf32>
    %77 = vector.shape_cast %76 : vector<8x8xf32> to vector<1x8x8xf32>
    %78 = arith.truncf %77 : vector<1x8x8xf32> to vector<1x8x8xbf16>
    "tpu.trace_start"() <{level = 10 : i32, message = "bqd,bkd->bqk"}> : () -> ()
    %cst_27 = arith.constant dense<0.000000e+00> : vector<1x8x8xf32>
    %79 = tpu.matmul %72, %75, %cst_27 {dimension_numbers = #tpu.dot_dimension_numbers<[2], [2], [1], [1], [0, 0, 0, 1, 1, 1], [0], [0]>} : vector<1x8x8xbf16>, vector<1x8x8xbf16>, vector<1x8x8xf32> -> vector<1x8x8xf32>
    "tpu.trace_stop"() : () -> ()
    %80 = vector.shape_cast %8 : vector<8x8xf32> to vector<1x8x8xf32>
    %81 = arith.addf %79, %80 : vector<1x8x8xf32>
    %cst_28 = arith.constant dense<0xFF800000> : vector<1x8xf32>
    %82 = vector.multi_reduction <maximumf>, %81, %cst_28 [2] : vector<1x8x8xf32> to vector<1x8xf32>
    %83 = vector.shape_cast %82 : vector<1x8xf32> to vector<1x8x1xf32>
    %84 = vector.broadcast %83 : vector<1x8x1xf32> to vector<1x8x8xf32>
    %85 = arith.subf %81, %84 : vector<1x8x8xf32>
    %86 = math.exp %85 : vector<1x8x8xf32>
    %cst_29 = arith.constant dense<0.000000e+00> : vector<1x8xf32>
    %87 = vector.multi_reduction <add>, %86, %cst_29 [2] : vector<1x8x8xf32> to vector<1x8xf32>
    %88 = vector.shape_cast %87 : vector<1x8xf32> to vector<1x8x1xf32>
    %89 = tpu.reciprocal %88 {approx = true} : vector<1x8x1xf32> -> vector<1x8x1xf32>
    %90 = vector.broadcast %89 : vector<1x8x1xf32> to vector<1x8x8xf32>
    %91 = arith.mulf %86, %90 : vector<1x8x8xf32>
    %92 = arith.truncf %91 : vector<1x8x8xf32> to vector<1x8x8xbf16>
    "tpu.trace_start"() <{level = 10 : i32, message = "bqk,bkd->bqd"}> : () -> ()
    %cst_30 = arith.constant dense<0.000000e+00> : vector<1x8x8xf32>
    %93 = tpu.matmul %92, %78, %cst_30 {dimension_numbers = #tpu.dot_dimension_numbers<[2], [1], [1], [2], [0, 0, 0, 1, 1, 2], [0], [0]>} : vector<1x8x8xbf16>, vector<1x8x8xbf16>, vector<1x8x8xf32> -> vector<1x8x8xf32>
    "tpu.trace_stop"() : () -> ()
    %94 = vector.shape_cast %93 : vector<1x8x8xf32> to vector<8x8xf32>
    %c0_31 = arith.constant 0 : index
    %c8 = arith.constant 8 : index
    %95 = vector.load %arg23[%c0_31, %c8] : memref<8x32xf32, #tpu.memory_space<vmem>>, vector<8x8xf32>
    tpu.vector_store %arg23[%c0_31, %c8], %94 {strides = array<i32>} : memref<8x32xf32, #tpu.memory_space<vmem>>, vector<8x8xf32>,
    %96 = vector.extract_strided_slice %43 {offsets = [0, 16], sizes = [8, 8], strides = [1, 1]} : vector<8x96xf32> to vector<8x8xf32>
    %97 = vector.shape_cast %96 : vector<8x8xf32> to vector<1x8x8xf32>
    %98 = arith.truncf %97 : vector<1x8x8xf32> to vector<1x8x8xbf16>
    %99 = vector.extract_strided_slice %43 {offsets = [0, 48], sizes = [8, 8], strides = [1, 1]} : vector<8x96xf32> to vector<8x8xf32>
    %100 = vector.shape_cast %99 : vector<8x8xf32> to vector<1x8x8xf32>
    %101 = arith.truncf %100 : vector<1x8x8xf32> to vector<1x8x8xbf16>
    %102 = vector.extract_strided_slice %43 {offsets = [0, 80], sizes = [8, 8], strides = [1, 1]} : vector<8x96xf32> to vector<8x8xf32>
    %103 = vector.shape_cast %102 : vector<8x8xf32> to vector<1x8x8xf32>
    %104 = arith.truncf %103 : vector<1x8x8xf32> to vector<1x8x8xbf16>
    "tpu.trace_start"() <{level = 10 : i32, message = "bqd,bkd->bqk"}> : () -> ()
    %cst_32 = arith.constant dense<0.000000e+00> : vector<1x8x8xf32>
    %105 = tpu.matmul %98, %101, %cst_32 {dimension_numbers = #tpu.dot_dimension_numbers<[2], [2], [1], [1], [0, 0, 0, 1, 1, 1], [0], [0]>} : vector<1x8x8xbf16>, vector<1x8x8xbf16>, vector<1x8x8xf32> -> vector<1x8x8xf32>
    "tpu.trace_stop"() : () -> ()
    %106 = vector.shape_cast %8 : vector<8x8xf32> to vector<1x8x8xf32>
    %107 = arith.addf %105, %106 : vector<1x8x8xf32>
    %cst_33 = arith.constant dense<0xFF800000> : vector<1x8xf32>
    %108 = vector.multi_reduction <maximumf>, %107, %cst_33 [2] : vector<1x8x8xf32> to vector<1x8xf32>
    %109 = vector.shape_cast %108 : vector<1x8xf32> to vector<1x8x1xf32>
    %110 = vector.broadcast %109 : vector<1x8x1xf32> to vector<1x8x8xf32>
    %111 = arith.subf %107, %110 : vector<1x8x8xf32>
    %112 = math.exp %111 : vector<1x8x8xf32>
    %cst_34 = arith.constant dense<0.000000e+00> : vector<1x8xf32>
    %113 = vector.multi_reduction <add>, %112, %cst_34 [2] : vector<1x8x8xf32> to vector<1x8xf32>
    %114 = vector.shape_cast %113 : vector<1x8xf32> to vector<1x8x1xf32>
    %115 = tpu.reciprocal %114 {approx = true} : vector<1x8x1xf32> -> vector<1x8x1xf32>
    %116 = vector.broadcast %115 : vector<1x8x1xf32> to vector<1x8x8xf32>
    %117 = arith.mulf %112, %116 : vector<1x8x8xf32>
    %118 = arith.truncf %117 : vector<1x8x8xf32> to vector<1x8x8xbf16>
    "tpu.trace_start"() <{level = 10 : i32, message = "bqk,bkd->bqd"}> : () -> ()
    %cst_35 = arith.constant dense<0.000000e+00> : vector<1x8x8xf32>
    %119 = tpu.matmul %118, %104, %cst_35 {dimension_numbers = #tpu.dot_dimension_numbers<[2], [1], [1], [2], [0, 0, 0, 1, 1, 2], [0], [0]>} : vector<1x8x8xbf16>, vector<1x8x8xbf16>, vector<1x8x8xf32> -> vector<1x8x8xf32>
    "tpu.trace_stop"() : () -> ()
    %120 = vector.shape_cast %119 : vector<1x8x8xf32> to vector<8x8xf32>
    %c0_36 = arith.constant 0 : index
    %c16 = arith.constant 16 : index
    %121 = vector.load %arg23[%c0_36, %c16] : memref<8x32xf32, #tpu.memory_space<vmem>>, vector<8x8xf32>
    tpu.vector_store %arg23[%c0_36, %c16], %120 {strides = array<i32>} : memref<8x32xf32, #tpu.memory_space<vmem>>, vector<8x8xf32>,
    %122 = vector.extract_strided_slice %43 {offsets = [0, 24], sizes = [8, 8], strides = [1, 1]} : vector<8x96xf32> to vector<8x8xf32>
    %123 = vector.shape_cast %122 : vector<8x8xf32> to vector<1x8x8xf32>
    %124 = arith.truncf %123 : vector<1x8x8xf32> to vector<1x8x8xbf16>
    %125 = vector.extract_strided_slice %43 {offsets = [0, 56], sizes = [8, 8], strides = [1, 1]} : vector<8x96xf32> to vector<8x8xf32>
    %126 = vector.shape_cast %125 : vector<8x8xf32> to vector<1x8x8xf32>
    %127 = arith.truncf %126 : vector<1x8x8xf32> to vector<1x8x8xbf16>
    %128 = vector.extract_strided_slice %43 {offsets = [0, 88], sizes = [8, 8], strides = [1, 1]} : vector<8x96xf32> to vector<8x8xf32>
    %129 = vector.shape_cast %128 : vector<8x8xf32> to vector<1x8x8xf32>
    %130 = arith.truncf %129 : vector<1x8x8xf32> to vector<1x8x8xbf16>
    "tpu.trace_start"() <{level = 10 : i32, message = "bqd,bkd->bqk"}> : () -> ()
    %cst_37 = arith.constant dense<0.000000e+00> : vector<1x8x8xf32>
    %131 = tpu.matmul %124, %127, %cst_37 {dimension_numbers = #tpu.dot_dimension_numbers<[2], [2], [1], [1], [0, 0, 0, 1, 1, 1], [0], [0]>} : vector<1x8x8xbf16>, vector<1x8x8xbf16>, vector<1x8x8xf32> -> vector<1x8x8xf32>
    "tpu.trace_stop"() : () -> ()
    %132 = vector.shape_cast %8 : vector<8x8xf32> to vector<1x8x8xf32>
    %133 = arith.addf %131, %132 : vector<1x8x8xf32>
    %cst_38 = arith.constant dense<0xFF800000> : vector<1x8xf32>
    %134 = vector.multi_reduction <maximumf>, %133, %cst_38 [2] : vector<1x8x8xf32> to vector<1x8xf32>
    %135 = vector.shape_cast %134 : vector<1x8xf32> to vector<1x8x1xf32>
    %136 = vector.broadcast %135 : vector<1x8x1xf32> to vector<1x8x8xf32>
    %137 = arith.subf %133, %136 : vector<1x8x8xf32>
    %138 = math.exp %137 : vector<1x8x8xf32>
    %cst_39 = arith.constant dense<0.000000e+00> : vector<1x8xf32>
    %139 = vector.multi_reduction <add>, %138, %cst_39 [2] : vector<1x8x8xf32> to vector<1x8xf32>
    %140 = vector.shape_cast %139 : vector<1x8xf32> to vector<1x8x1xf32>
    %141 = tpu.reciprocal %140 {approx = true} : vector<1x8x1xf32> -> vector<1x8x1xf32>
    %142 = vector.broadcast %141 : vector<1x8x1xf32> to vector<1x8x8xf32>
    %143 = arith.mulf %138, %142 : vector<1x8x8xf32>
    %144 = arith.truncf %143 : vector<1x8x8xf32> to vector<1x8x8xbf16>
    "tpu.trace_start"() <{level = 10 : i32, message = "bqk,bkd->bqd"}> : () -> ()
    %cst_40 = arith.constant dense<0.000000e+00> : vector<1x8x8xf32>
    %145 = tpu.matmul %144, %130, %cst_40 {dimension_numbers = #tpu.dot_dimension_numbers<[2], [1], [1], [2], [0, 0, 0, 1, 1, 2], [0], [0]>} : vector<1x8x8xbf16>, vector<1x8x8xbf16>, vector<1x8x8xf32> -> vector<1x8x8xf32>
    "tpu.trace_stop"() : () -> ()
    %146 = vector.shape_cast %145 : vector<1x8x8xf32> to vector<8x8xf32>
    %c0_41 = arith.constant 0 : index
    %c24 = arith.constant 24 : index
    %147 = vector.load %arg23[%c0_41, %c24] : memref<8x32xf32, #tpu.memory_space<vmem>>, vector<8x8xf32>
    tpu.vector_store %arg23[%c0_41, %c24], %146 {strides = array<i32>} : memref<8x32xf32, #tpu.memory_space<vmem>>, vector<8x8xf32>,
    %c0_42 = arith.constant 0 : index
    %c0_43 = arith.constant 0 : index
    %148 = vector.load %arg23[%c0_42, %c0_43] : memref<8x32xf32, #tpu.memory_space<vmem>>, vector<8x32xf32>
    %149 = arith.truncf %148 : vector<8x32xf32> to vector<8x32xbf16>
    %c0_44 = arith.constant 0 : index
    %c0_45 = arith.constant 0 : index
    %c0_46 = arith.constant 0 : index
    %150 = vector.load %arg7[%c0_44, %c0_45, %c0_46] : memref<1x32x32xbf16, #tpu.memory_space<vmem>>, vector<1x32x32xbf16>
    %151 = vector.shape_cast %150 : vector<1x32x32xbf16> to vector<32x32xbf16>
    %cst_47 = arith.constant dense<0.000000e+00> : vector<8x32xf32>
    %152 = tpu.matmul %149, %151, %cst_47 {dimension_numbers = #tpu.dot_dimension_numbers<[1], [0], [0], [1], [0, 0, 1, 1], [], []>} : vector<8x32xbf16>, vector<32x32xbf16>, vector<8x32xf32> -> vector<8x32xf32>
    %c0_48 = arith.constant 0 : index
    %c0_49 = arith.constant 0 : index
    %c0_50 = arith.constant 0 : index
    %153 = vector.load %arg8[%c0_48, %c0_49, %c0_50] : memref<1x1x32xf32, #tpu.memory_space<vmem>>, vector<1x1x32xf32>
    %154 = vector.shape_cast %153 : vector<1x1x32xf32> to vector<1x32xf32>
    %155 = vector.broadcast %154 : vector<1x32xf32> to vector<8x32xf32>
    %156 = arith.addf %152, %155 : vector<8x32xf32>
    %157 = arith.addf %35, %156 : vector<8x32xf32>
    %c0_51 = arith.constant 0 : index
    %c0_52 = arith.constant 0 : index
    %c0_53 = arith.constant 0 : index
    %158 = vector.load %arg11[%c0_51, %c0_52, %c0_53] : memref<1x1x32xf32, #tpu.memory_space<vmem>>, vector<1x1x32xf32>
    %159 = vector.shape_cast %158 : vector<1x1x32xf32> to vector<1x32xf32>
    %c0_54 = arith.constant 0 : index
    %c0_55 = arith.constant 0 : index
    %c0_56 = arith.constant 0 : index
    %160 = vector.load %arg12[%c0_54, %c0_55, %c0_56] : memref<1x1x32xf32, #tpu.memory_space<vmem>>, vector<1x1x32xf32>
    %161 = vector.shape_cast %160 : vector<1x1x32xf32> to vector<1x32xf32>
    %cst_57 = arith.constant dense<0.000000e+00> : vector<8xf32>
    %162 = vector.multi_reduction <add>, %157, %cst_57 [1] : vector<8x32xf32> to vector<8xf32>
    %163 = vector.shape_cast %162 : vector<8xf32> to vector<8x1xf32>
    %cst_58 = arith.constant 3.200000e+01 : f32
    %164 = vector.broadcast %cst_58 : f32 to vector<8x1xf32>
    %165 = arith.divf %163, %164 : vector<8x1xf32>
    %166 = vector.broadcast %165 : vector<8x1xf32> to vector<8x32xf32>
    %167 = arith.subf %157, %166 : vector<8x32xf32>
    %168 = arith.mulf %167, %167 : vector<8x32xf32>
    %cst_59 = arith.constant dense<0.000000e+00> : vector<8xf32>
    %169 = vector.multi_reduction <add>, %168, %cst_59 [1] : vector<8x32xf32> to vector<8xf32>
    %170 = vector.shape_cast %169 : vector<8xf32> to vector<8x1xf32>
    %cst_60 = arith.constant 3.200000e+01 : f32
    %171 = vector.broadcast %cst_60 : f32 to vector<8x1xf32>
    %172 = arith.divf %170, %171 : vector<8x1xf32>
    %173 = vector.broadcast %165 : vector<8x1xf32> to vector<8x32xf32>
    %174 = arith.subf %157, %173 : vector<8x32xf32>
    %cst_61 = arith.constant 9.99999974E-6 : f32
    %175 = vector.broadcast %cst_61 : f32 to vector<8x1xf32>
    %176 = arith.addf %172, %175 : vector<8x1xf32>
    %177 = math.rsqrt %176 : vector<8x1xf32>
    %178 = vector.broadcast %177 : vector<8x1xf32> to vector<8x32xf32>
    %179 = arith.mulf %174, %178 : vector<8x32xf32>
    %180 = vector.broadcast %159 : vector<1x32xf32> to vector<8x32xf32>
    %181 = arith.mulf %179, %180 : vector<8x32xf32>
    %182 = vector.broadcast %161 : vector<1x32xf32> to vector<8x32xf32>
    %183 = arith.addf %181, %182 : vector<8x32xf32>
    %184 = arith.truncf %183 : vector<8x32xf32> to vector<8x32xbf16>
    %c0_62 = arith.constant 0 : index
    %c0_63 = arith.constant 0 : index
    %c0_64 = arith.constant 0 : index
    %185 = vector.load %arg13[%c0_62, %c0_63, %c0_64] : memref<1x32x128xbf16, #tpu.memory_space<vmem>>, vector<1x32x128xbf16>
    %186 = vector.shape_cast %185 : vector<1x32x128xbf16> to vector<32x128xbf16>
    %cst_65 = arith.constant dense<0.000000e+00> : vector<8x128xf32>
    %187 = tpu.matmul %184, %186, %cst_65 {dimension_numbers = #tpu.dot_dimension_numbers<[1], [0], [0], [1], [0, 0, 1, 1], [], []>} : vector<8x32xbf16>, vector<32x128xbf16>, vector<8x128xf32> -> vector<8x128xf32>
    %c0_66 = arith.constant 0 : index
    %c0_67 = arith.constant 0 : index
    %c0_68 = arith.constant 0 : index
    %188 = vector.load %arg14[%c0_66, %c0_67, %c0_68] : memref<1x1x128xf32, #tpu.memory_space<vmem>>, vector<1x1x128xf32>
    %189 = vector.shape_cast %188 : vector<1x1x128xf32> to vector<1x128xf32>
    %190 = vector.broadcast %189 : vector<1x128xf32> to vector<8x128xf32>
    %191 = arith.addf %187, %190 : vector<8x128xf32>
    %cst_69 = arith.constant 5.000000e-01 : f32
    %192 = vector.broadcast %cst_69 : f32 to vector<8x128xf32>
    %193 = arith.mulf %192, %191 : vector<8x128xf32>
    %cst_70 = arith.constant 4.471500e-02 : f32
    %194 = vector.broadcast %cst_70 : f32 to vector<8x128xf32>
    %195 = arith.mulf %194, %191 : vector<8x128xf32>
    %196 = arith.mulf %195, %191 : vector<8x128xf32>
    %197 = arith.mulf %196, %191 : vector<8x128xf32>
    %198 = arith.addf %191, %197 : vector<8x128xf32>
    %cst_71 = arith.constant 0.797884583 : f32
    %199 = vector.broadcast %cst_71 : f32 to vector<8x128xf32>
    %200 = arith.mulf %199, %198 : vector<8x128xf32>
    %201 = math.tanh %200 : vector<8x128xf32>
    %cst_72 = arith.constant 1.000000e+00 : f32
    %202 = vector.broadcast %cst_72 : f32 to vector<8x128xf32>
    %203 = arith.addf %202, %201 : vector<8x128xf32>
    %204 = arith.mulf %193, %203 : vector<8x128xf32>
    %205 = arith.truncf %204 : vector<8x128xf32> to vector<8x128xbf16>
    %c0_73 = arith.constant 0 : index
    %c0_74 = arith.constant 0 : index
    %c0_75 = arith.constant 0 : index
    %206 = vector.load %arg15[%c0_73, %c0_74, %c0_75] : memref<1x128x32xbf16, #tpu.memory_space<vmem>>, vector<1x128x32xbf16>
    %207 = vector.shape_cast %206 : vector<1x128x32xbf16> to vector<128x32xbf16>
    %cst_76 = arith.constant dense<0.000000e+00> : vector<8x32xf32>
    %208 = tpu.matmul %205, %207, %cst_76 {dimension_numbers = #tpu.dot_dimension_numbers<[1], [0], [0], [1], [0, 0, 1, 1], [], []>} : vector<8x128xbf16>, vector<128x32xbf16>, vector<8x32xf32> -> vector<8x32xf32>
    %c0_77 = arith.constant 0 : index
    %c0_78 = arith.constant 0 : index
    %c0_79 = arith.constant 0 : index
    %209 = vector.load %arg16[%c0_77, %c0_78, %c0_79] : memref<1x1x32xf32, #tpu.memory_space<vmem>>, vector<1x1x32xf32>
    %210 = vector.shape_cast %209 : vector<1x1x32xf32> to vector<1x32xf32>
    %211 = vector.broadcast %210 : vector<1x32xf32> to vector<8x32xf32>
    %212 = arith.addf %208, %211 : vector<8x32xf32>
    %213 = arith.addf %183, %212 : vector<8x32xf32>
    %c0_80 = arith.constant 0 : index
    %c0_81 = arith.constant 0 : index
    %214 = vector.load %arg22[%c0_80, %c0_81] : memref<8x32xf32, #tpu.memory_space<vmem>>, vector<8x32xf32>
    tpu.vector_store %arg22[%c0_80, %c0_81], %213 {strides = array<i32>} : memref<8x32xf32, #tpu.memory_space<vmem>>, vector<8x32xf32>,
    %c2_i32 = arith.constant 2 : i32
    %215 = arith.cmpi eq, %arg1, %c2_i32 : i32
    %216 = arith.extui %215 : i1 to i32
    %c0_i32_82 = arith.constant 0 : i32
    %217 = arith.cmpi ne, %216, %c0_i32_82 : i32
    scf.if %217 {
      %c0_83 = arith.constant 0 : index
      %c0_84 = arith.constant 0 : index
      %218 = vector.load %arg22[%c0_83, %c0_84] : memref<8x32xf32, #tpu.memory_space<vmem>>, vector<8x32xf32>
      %c0_85 = arith.constant 0 : index
      %c0_86 = arith.constant 0 : index
      %219 = vector.load %arg17[%c0_85, %c0_86] : memref<1x32xf32, #tpu.memory_space<vmem>>, vector<1x32xf32>
      %c0_87 = arith.constant 0 : index
      %c0_88 = arith.constant 0 : index
      %220 = vector.load %arg18[%c0_87, %c0_88] : memref<1x32xf32, #tpu.memory_space<vmem>>, vector<1x32xf32>
      %cst_89 = arith.constant dense<0.000000e+00> : vector<8xf32>
      %221 = vector.multi_reduction <add>, %218, %cst_89 [1] : vector<8x32xf32> to vector<8xf32>
      %222 = vector.shape_cast %221 : vector<8xf32> to vector<8x1xf32>
      %cst_90 = arith.constant 3.200000e+01 : f32
      %223 = vector.broadcast %cst_90 : f32 to vector<8x1xf32>
      %224 = arith.divf %222, %223 : vector<8x1xf32>
      %225 = vector.broadcast %224 : vector<8x1xf32> to vector<8x32xf32>
      %226 = arith.subf %218, %225 : vector<8x32xf32>
      %227 = arith.mulf %226, %226 : vector<8x32xf32>
      %cst_91 = arith.constant dense<0.000000e+00> : vector<8xf32>
      %228 = vector.multi_reduction <add>, %227, %cst_91 [1] : vector<8x32xf32> to vector<8xf32>
      %229 = vector.shape_cast %228 : vector<8xf32> to vector<8x1xf32>
      %cst_92 = arith.constant 3.200000e+01 : f32
      %230 = vector.broadcast %cst_92 : f32 to vector<8x1xf32>
      %231 = arith.divf %229, %230 : vector<8x1xf32>
      %232 = vector.broadcast %224 : vector<8x1xf32> to vector<8x32xf32>
      %233 = arith.subf %218, %232 : vector<8x32xf32>
      %cst_93 = arith.constant 9.99999974E-6 : f32
      %234 = vector.broadcast %cst_93 : f32 to vector<8x1xf32>
      %235 = arith.addf %231, %234 : vector<8x1xf32>
      %236 = math.rsqrt %235 : vector<8x1xf32>
      %237 = vector.broadcast %236 : vector<8x1xf32> to vector<8x32xf32>
      %238 = arith.mulf %233, %237 : vector<8x32xf32>
      %239 = vector.broadcast %219 : vector<1x32xf32> to vector<8x32xf32>
      %240 = arith.mulf %238, %239 : vector<8x32xf32>
      %241 = vector.broadcast %220 : vector<1x32xf32> to vector<8x32xf32>
      %242 = arith.addf %240, %241 : vector<8x32xf32>
      %243 = arith.truncf %242 : vector<8x32xf32> to vector<8x32xbf16>
      %c0_94 = arith.constant 0 : index
      %c0_95 = arith.constant 0 : index
      %244 = vector.load %arg19[%c0_94, %c0_95] : memref<32x128xbf16, #tpu.memory_space<vmem>>, vector<32x128xbf16>
      %cst_96 = arith.constant dense<0.000000e+00> : vector<8x128xf32>
      %245 = tpu.matmul %243, %244, %cst_96 {dimension_numbers = #tpu.dot_dimension_numbers<[1], [0], [0], [1], [0, 0, 1, 1], [], []>} : vector<8x32xbf16>, vector<32x128xbf16>, vector<8x128xf32> -> vector<8x128xf32>
      %c0_97 = arith.constant 0 : index
      %c0_98 = arith.constant 0 : index
      %246 = vector.load %arg20[%c0_97, %c0_98] : memref<1x128xf32, #tpu.memory_space<vmem>>, vector<1x128xf32>
      %247 = vector.broadcast %246 : vector<1x128xf32> to vector<8x128xf32>
      %248 = arith.addf %245, %247 : vector<8x128xf32>
      %c0_99 = arith.constant 0 : index
      %c0_100 = arith.constant 0 : index
      %249 = vector.load %arg21[%c0_99, %c0_100] : memref<8x128xf32, #tpu.memory_space<vmem>>, vector<8x128xf32>
      tpu.vector_store %arg21[%c0_99, %c0_100], %248 {strides = array<i32>} : memref<8x128xf32, #tpu.memory_space<vmem>>, vector<8x128xf32>,
    } else {
    }
    return
  }
  func.func @transform_0(%arg0: i32, %arg1: i32) -> (i32, i32) {
    %c0_i32 = arith.constant 0 : i32
    %c0_i32_0 = arith.constant 0 : i32
    return %arg0, %c0_i32 : i32, i32
  }
  func.func @transform_1(%arg0: i32, %arg1: i32) -> (i32, i32) {
    %c0_i32 = arith.constant 0 : i32
    %c0_i32_0 = arith.constant 0 : i32
    %c0_i32_1 = arith.constant 0 : i32
    return %c0_i32, %c0_i32_0 : i32, i32
  }
  func.func @transform_2(%arg0: i32, %arg1: i32) -> (i32, i32) {
    %c0_i32 = arith.constant 0 : i32
    %c0_i32_0 = arith.constant 0 : i32
    %c0_i32_1 = arith.constant 0 : i32
    return %c0_i32, %c0_i32_0 : i32, i32
  }
  func.func @transform_3(%arg0: i32, %arg1: i32) -> (i32, i32, i32) {
    %c0_i32 = arith.constant 0 : i32
    %c0_i32_0 = arith.constant 0 : i32
    %c0_i32_1 = arith.constant 0 : i32
    return %arg1, %c0_i32, %c0_i32_0 : i32, i32, i32
  }
  func.func @transform_4(%arg0: i32, %arg1: i32) -> (i32, i32, i32) {
    %c0_i32 = arith.constant 0 : i32
    %c0_i32_0 = arith.constant 0 : i32
    %c0_i32_1 = arith.constant 0 : i32
    return %arg1, %c0_i32, %c0_i32_0 : i32, i32, i32
  }
  func.func @transform_5(%arg0: i32, %arg1: i32) -> (i32, i32, i32) {
    %c0_i32 = arith.constant 0 : i32
    %c0_i32_0 = arith.constant 0 : i32
    %c0_i32_1 = arith.constant 0 : i32
    return %arg1, %c0_i32, %c0_i32_0 : i32, i32, i32
  }
  func.func @transform_6(%arg0: i32, %arg1: i32) -> (i32, i32, i32) {
    %c0_i32 = arith.constant 0 : i32
    %c0_i32_0 = arith.constant 0 : i32
    %c0_i32_1 = arith.constant 0 : i32
    return %arg1, %c0_i32, %c0_i32_0 : i32, i32, i32
  }
  func.func @transform_7(%arg0: i32, %arg1: i32) -> (i32, i32, i32) {
    %c0_i32 = arith.constant 0 : i32
    %c0_i32_0 = arith.constant 0 : i32
    %c0_i32_1 = arith.constant 0 : i32
    return %arg1, %c0_i32, %c0_i32_0 : i32, i32, i32
  }
  func.func @transform_8(%arg0: i32, %arg1: i32) -> (i32, i32, i32) {
    %c0_i32 = arith.constant 0 : i32
    %c0_i32_0 = arith.constant 0 : i32
    %c0_i32_1 = arith.constant 0 : i32
    return %arg1, %c0_i32, %c0_i32_0 : i32, i32, i32
  }
  func.func @transform_9(%arg0: i32, %arg1: i32) -> (i32, i32, i32) {
    %c0_i32 = arith.constant 0 : i32
    %c0_i32_0 = arith.constant 0 : i32
    %c0_i32_1 = arith.constant 0 : i32
    return %arg1, %c0_i32, %c0_i32_0 : i32, i32, i32
  }
  func.func @transform_10(%arg0: i32, %arg1: i32) -> (i32, i32, i32) {
    %c0_i32 = arith.constant 0 : i32
    %c0_i32_0 = arith.constant 0 : i32
    %c0_i32_1 = arith.constant 0 : i32
    return %arg1, %c0_i32, %c0_i32_0 : i32, i32, i32
  }
  func.func @transform_11(%arg0: i32, %arg1: i32) -> (i32, i32, i32) {
    %c0_i32 = arith.constant 0 : i32
    %c0_i32_0 = arith.constant 0 : i32
    %c0_i32_1 = arith.constant 0 : i32
    return %arg1, %c0_i32, %c0_i32_0 : i32, i32, i32
  }
  func.func @transform_12(%arg0: i32, %arg1: i32) -> (i32, i32, i32) {
    %c0_i32 = arith.constant 0 : i32
    %c0_i32_0 = arith.constant 0 : i32
    %c0_i32_1 = arith.constant 0 : i32
    return %arg1, %c0_i32, %c0_i32_0 : i32, i32, i32
  }
  func.func @transform_13(%arg0: i32, %arg1: i32) -> (i32, i32, i32) {
    %c0_i32 = arith.constant 0 : i32
    %c0_i32_0 = arith.constant 0 : i32
    %c0_i32_1 = arith.constant 0 : i32
    return %arg1, %c0_i32, %c0_i32_0 : i32, i32, i32
  }
  func.func @transform_14(%arg0: i32, %arg1: i32) -> (i32, i32, i32) {
    %c0_i32 = arith.constant 0 : i32
    %c0_i32_0 = arith.constant 0 : i32
    %c0_i32_1 = arith.constant 0 : i32
    return %arg1, %c0_i32, %c0_i32_0 : i32, i32, i32
  }
  func.func @transform_15(%arg0: i32, %arg1: i32) -> (i32, i32) {
    %c0_i32 = arith.constant 0 : i32
    %c0_i32_0 = arith.constant 0 : i32
    %c0_i32_1 = arith.constant 0 : i32
    return %c0_i32, %c0_i32_0 : i32, i32
  }
  func.func @transform_16(%arg0: i32, %arg1: i32) -> (i32, i32) {
    %c0_i32 = arith.constant 0 : i32
    %c0_i32_0 = arith.constant 0 : i32
    %c0_i32_1 = arith.constant 0 : i32
    return %c0_i32, %c0_i32_0 : i32, i32
  }
  func.func @transform_17(%arg0: i32, %arg1: i32) -> (i32, i32) {
    %c0_i32 = arith.constant 0 : i32
    %c0_i32_0 = arith.constant 0 : i32
    %c0_i32_1 = arith.constant 0 : i32
    return %c0_i32, %c0_i32_0 : i32, i32
  }
  func.func @transform_18(%arg0: i32, %arg1: i32) -> (i32, i32) {
    %c0_i32 = arith.constant 0 : i32
    %c0_i32_0 = arith.constant 0 : i32
    %c0_i32_1 = arith.constant 0 : i32
    return %c0_i32, %c0_i32_0 : i32, i32
  }
  func.func @transform_19(%arg0: i32, %arg1: i32) -> (i32, i32) {
    %c0_i32 = arith.constant 0 : i32
    %c0_i32_0 = arith.constant 0 : i32
    return %arg0, %c0_i32 : i32, i32
  }
}

</mosaic_0001>

<llo_original>
// kernel: tpu_custom_call.1
$region0: #{tpu_custom_call.1}
  #allocation0 [shape = 'u32[]', space=smem, size = 0x4, offset = 0x4, fixed_abs, tag = 'smem constant byte address 0x4 - core index']
  #allocation1 [shape = 'u32[72,128]{1,0:T(1,128)}', space=vmem, size = 0x9000, scoped, tag = 'internal scratch']
  #allocation2 [shape = 'f32[8,32]{1,0:T(8,128)}', space=vmem, size = 0x1000, scoped, tag = 'scratch operand']
  #allocation3 [shape = 'f32[8,32]{1,0:T(8,128)}', space=vmem, size = 0x1000, scoped, tag = 'scratch operand']
  %s0 = inlined_call_operand.vmem [shape: f32[16,128], index: 0, kind: input, shape index: {}]
  %s1 = inlined_call_operand.vmem [shape: f32[8,32], index: 1, kind: input, shape index: {}]
  %s2 = inlined_call_operand.vmem [shape: bf16[128,32], index: 2, kind: input, shape index: {}]
  %s3 = inlined_call_operand.vmem [shape: bf16[3,32,96], index: 3, kind: input, shape index: {}]
  %s4 = inlined_call_operand.vmem [shape: f32[3,1,96], index: 4, kind: input, shape index: {}]
  %s5 = inlined_call_operand.vmem [shape: bf16[3,32,32], index: 5, kind: input, shape index: {}]
  %s6 = inlined_call_operand.vmem [shape: f32[3,1,32], index: 6, kind: input, shape index: {}]
  %s7 = inlined_call_operand.vmem [shape: f32[3,1,32], index: 7, kind: input, shape index: {}]
  %s8 = inlined_call_operand.vmem [shape: f32[3,1,32], index: 8, kind: input, shape index: {}]
  %s9 = inlined_call_operand.vmem [shape: f32[3,1,32], index: 9, kind: input, shape index: {}]
  %s10 = inlined_call_operand.vmem [shape: f32[3,1,32], index: 10, kind: input, shape index: {}]
  %s11 = inlined_call_operand.vmem [shape: bf16[3,32,128], index: 11, kind: input, shape index: {}]
  %s12 = inlined_call_operand.vmem [shape: f32[3,1,128], index: 12, kind: input, shape index: {}]
  %s13 = inlined_call_operand.vmem [shape: bf16[3,128,32], index: 13, kind: input, shape index: {}]
  %s14 = inlined_call_operand.vmem [shape: f32[3,1,32], index: 14, kind: input, shape index: {}]
  %s15 = inlined_call_operand.vmem [shape: f32[1,32], index: 15, kind: input, shape index: {}]
  %s16 = inlined_call_operand.vmem [shape: f32[1,32], index: 16, kind: input, shape index: {}]
  %s17 = inlined_call_operand.vmem [shape: bf16[32,128], index: 17, kind: input, shape index: {}]
  %s18 = inlined_call_operand.vmem [shape: f32[1,128], index: 18, kind: input, shape index: {}]
  %s19 = inlined_call_operand.hbm [shape: f32[16,128], index: 19, kind: output, shape index: {}]
  %s20 = sld [smem:[#allocation0]]
  $region117: #{tpu_custom_call.1} parent=0
    _
  %s22 = ssub.s32 1, %s20
  %s23 = scalar_select 0, %s22, %s20
  $region1: #{tpu_custom_call.1} parent=0
    #allocation4 [shape = 'u8[8192]{0}', space=vmem, size = 0x2000, scoped, tag = 'output window, operand 0']
    #allocation5 [shape = 's32[2]{0}', space=sflag, size = 0x8, scoped, tag = 'scoped memory for tpu_custom_call.1']
    %24 = vsyncpa [#allocation5], 0
    %s25 = scalar_lea.sflag [#allocation5], 1
    %26 = vsyncpa %s25, 0
    loop: start=0, step=1, limit=8
    $region2: #{tpu_custom_call.1} parent=1 // loop_pre_header
      _
    $region3: #{tpu_custom_call.1} parent=1 // loop_header
      %s28 = sphi 0, %s32
      %p29 = scmp.ge.s32.totalorder %s28, 8
      %s35 = sphi 0, %s47
      %s36 = sphi 0, %s43
      %s37 = sphi 0, %s35
      %s38 = sphi 0, %s36
      %s39 = sphi 0, %s37
      %s40 = sphi 0, %s38
      %s50 = sphi 0, %s52
      %s53 = sphi 0, %s50
      %s54 = sphi 0, %s53
      %s70 = sphi 0, %s54
      %s74 = sphi 0, %s74
      %s76 = sphi 0, %s74
      %s77 = sphi 0, %s76
      %s91 = sphi 0, %s77
      %s95 = sphi 0, %s95
      %s97 = sphi 0, %s95
      %s98 = sphi 0, %s97
      %s112 = sphi 0, %s98
      %s118 = sphi 0, %s120
      %s121 = sphi 0, %s118
      %s122 = sphi 0, %s121
      %s138 = sphi 0, %s122
      %s144 = sphi 0, %s146
      %s147 = sphi 0, %s144
      %s148 = sphi 0, %s147
      %s164 = sphi 0, %s148
      %s170 = sphi 0, %s172
      %s173 = sphi 0, %s170
      %s174 = sphi 0, %s173
      %s190 = sphi 0, %s174
      %s196 = sphi 0, %s198
      %s199 = sphi 0, %s196
      %s200 = sphi 0, %s199
      %s216 = sphi 0, %s200
      %s222 = sphi 0, %s224
      %s225 = sphi 0, %s222
      %s226 = sphi 0, %s225
      %s242 = sphi 0, %s226
      %s248 = sphi 0, %s250
      %s251 = sphi 0, %s248
      %s252 = sphi 0, %s251
      %s268 = sphi 0, %s252
      %s274 = sphi 0, %s276
      %s277 = sphi 0, %s274
      %s278 = sphi 0, %s277
      %s294 = sphi 0, %s278
      %s300 = sphi 0, %s302
      %s303 = sphi 0, %s300
      %s304 = sphi 0, %s303
      %s320 = sphi 0, %s304
      %s326 = sphi 0, %s328
      %s329 = sphi 0, %s326
      %s330 = sphi 0, %s329
      %s346 = sphi 0, %s330
      %s352 = sphi 0, %s354
      %s355 = sphi 0, %s352
      %s356 = sphi 0, %s355
      %s372 = sphi 0, %s356
      %s378 = sphi 0, %s380
      %s381 = sphi 0, %s378
      %s382 = sphi 0, %s381
      %s398 = sphi 0, %s382
      %s404 = sphi 0, %s406
      %s407 = sphi 0, %s404
      %s408 = sphi 0, %s407
      %s424 = sphi 0, %s408
      %s428 = sphi 0, %s428
      %s430 = sphi 0, %s428
      %s431 = sphi 0, %s430
      %s445 = sphi 0, %s431
      %s449 = sphi 0, %s449
      %s451 = sphi 0, %s449
      %s452 = sphi 0, %s451
      %s466 = sphi 0, %s452
      %s470 = sphi 0, %s470
      %s472 = sphi 0, %s470
      %s473 = sphi 0, %s472
      %s487 = sphi 0, %s473
      %s491 = sphi 0, %s491
      %s493 = sphi 0, %s491
      %s494 = sphi 0, %s493
      %s508 = sphi 0, %s494
      %s514 = sphi 0, %s516
      %s517 = sphi 0, %s514
      %s518 = sphi 0, %s517
      %s534 = sphi 0, %s518
    $region4: #{tpu_custom_call.1} parent=1 // loop_header_branch
      %31 = sbr.rel (%p29) target = $region8
    $region5: #{tpu_custom_call.1} parent=1 // loop_body
      %s33 = ssub.s32 %s28, 1
      %s34 = ssub.s32 %s28, 2
      %s41 = sadd.s32 1, %s36
      %p42 = scmp.ge.s32.totalorder %s41, 3
      %s43 = scalar_select %p42, 0, %s41
      %s44 = sadd.s32 1, %s35
      %s45 = scalar_select %p42, %s44, %s35
      %p46 = scmp.ge.s32.totalorder %s45, 2
      %s47 = scalar_select %p46, 0, %s45
      %s48 = ssub.s32 %s35, %s47
      %p49 = scmp.eq.s32.totalorder %s48, 0
      %s51 = sadd.s32 %s50, 1
      %s52 = scalar_select %p49, %s50, %s51
      %p55 = pneg %p49
      %p56 = scmp.eq.s32.totalorder %s28, 5
      %p57 = por %p55, %p56
      %p58 = scmp.ne.s32.totalorder %s50, %s53
      %p59 = scmp.eq.s32.totalorder %s28, 0
      %p60 = por %p58, %p59
      %p61 = scmp.ne.s32.totalorder %s50, %s53
      %p62 = scmp.eq.s32.totalorder %s33, 5
      %p63 = por %p61, %p62
      %p64 = scmp.ne.s32.totalorder %s53, %s54
      %p65 = scmp.eq.s32.totalorder %s33, 0
      %p66 = por %p64, %p65
      %p67 = scmp.ne.s32.totalorder %s53, %s54
      %p68 = scmp.eq.s32.totalorder %s34, 5
      %p69 = por %p67, %p68
      %p71 = scmp.ne.s32.totalorder %s54, %s70
      %p72 = scmp.eq.s32.totalorder %s34, 0
      %p73 = por %p71, %p72
      %s75 = sadd.s32 %s74, 1
      %p78 = scmp.eq.s32.totalorder %s28, 5
      %p79 = scmp.ne.s32.totalorder %s74, %s76
      %p80 = scmp.eq.s32.totalorder %s28, 0
      %p81 = por %p79, %p80
      %p82 = scmp.ne.s32.totalorder %s74, %s76
      %p83 = scmp.eq.s32.totalorder %s33, 5
      %p84 = por %p82, %p83
      %p85 = scmp.ne.s32.totalorder %s76, %s77
      %p86 = scmp.eq.s32.totalorder %s33, 0
      %p87 = por %p85, %p86
      %p88 = scmp.ne.s32.totalorder %s76, %s77
      %p89 = scmp.eq.s32.totalorder %s34, 5
      %p90 = por %p88, %p89
      %p92 = scmp.ne.s32.totalorder %s77, %s91
      %p93 = scmp.eq.s32.totalorder %s34, 0
      %p94 = por %p92, %p93
      %s96 = sadd.s32 %s95, 1
      %p99 = scmp.eq.s32.totalorder %s28, 5
      %p100 = scmp.ne.s32.totalorder %s95, %s97
      %p101 = scmp.eq.s32.totalorder %s28, 0
      %p102 = por %p100, %p101
      %p103 = scmp.ne.s32.totalorder %s95, %s97
      %p104 = scmp.eq.s32.totalorder %s33, 5
      %p105 = por %p103, %p104
      %p106 = scmp.ne.s32.totalorder %s97, %s98
      %p107 = scmp.eq.s32.totalorder %s33, 0
      %p108 = por %p106, %p107
      %p109 = scmp.ne.s32.totalorder %s97, %s98
      %p110 = scmp.eq.s32.totalorder %s34, 5
      %p111 = por %p109, %p110
      %p113 = scmp.ne.s32.totalorder %s98, %s112
      %p114 = scmp.eq.s32.totalorder %s34, 0
      %p115 = por %p113, %p114
      %s116 = ssub.s32 %s36, %s43
      %p117 = scmp.eq.s32.totalorder %s116, 0
      %s119 = sadd.s32 %s118, 1
      %s120 = scalar_select %p117, %s118, %s119
      %p123 = pneg %p117
      %p124 = scmp.eq.s32.totalorder %s28, 5
      %p125 = por %p123, %p124
      %p126 = scmp.ne.s32.totalorder %s118, %s121
      %p127 = scmp.eq.s32.totalorder %s28, 0
      %p128 = por %p126, %p127
      %p129 = scmp.ne.s32.totalorder %s118, %s121
      %p130 = scmp.eq.s32.totalorder %s33, 5
      %p131 = por %p129, %p130
      %p132 = scmp.ne.s32.totalorder %s121, %s122
      %p133 = scmp.eq.s32.totalorder %s33, 0
      %p134 = por %p132, %p133
      %p135 = scmp.ne.s32.totalorder %s121, %s122
      %p136 = scmp.eq.s32.totalorder %s34, 5
      %p137 = por %p135, %p136
      %p139 = scmp.ne.s32.totalorder %s122, %s138
      %p140 = scmp.eq.s32.totalorder %s34, 0
      %p141 = por %p139, %p140
      %s142 = ssub.s32 %s36, %s43
      %p143 = scmp.eq.s32.totalorder %s142, 0
      %s145 = sadd.s32 %s144, 1
      %s146 = scalar_select %p143, %s144, %s145
      %p149 = pneg %p143
      %p150 = scmp.eq.s32.totalorder %s28, 5
      %p151 = por %p149, %p150
      %p152 = scmp.ne.s32.totalorder %s144, %s147
      %p153 = scmp.eq.s32.totalorder %s28, 0
      %p154 = por %p152, %p153
      %p155 = scmp.ne.s32.totalorder %s144, %s147
      %p156 = scmp.eq.s32.totalorder %s33, 5
      %p157 = por %p155, %p156
      %p158 = scmp.ne.s32.totalorder %s147, %s148
      %p159 = scmp.eq.s32.totalorder %s33, 0
      %p160 = por %p158, %p159
      %p161 = scmp.ne.s32.totalorder %s147, %s148
      %p162 = scmp.eq.s32.totalorder %s34, 5
      %p163 = por %p161, %p162
      %p165 = scmp.ne.s32.totalorder %s148, %s164
      %p166 = scmp.eq.s32.totalorder %s34, 0
      %p167 = por %p165, %p166
      %s168 = ssub.s32 %s36, %s43
      %p169 = scmp.eq.s32.totalorder %s168, 0
      %s171 = sadd.s32 %s170, 1
      %s172 = scalar_select %p169, %s170, %s171
      %p175 = pneg %p169
      %p176 = scmp.eq.s32.totalorder %s28, 5
      %p177 = por %p175, %p176
      %p178 = scmp.ne.s32.totalorder %s170, %s173
      %p179 = scmp.eq.s32.totalorder %s28, 0
      %p180 = por %p178, %p179
      %p181 = scmp.ne.s32.totalorder %s170, %s173
      %p182 = scmp.eq.s32.totalorder %s33, 5
      %p183 = por %p181, %p182
      %p184 = scmp.ne.s32.totalorder %s173, %s174
      %p185 = scmp.eq.s32.totalorder %s33, 0
      %p186 = por %p184, %p185
      %p187 = scmp.ne.s32.totalorder %s173, %s174
      %p188 = scmp.eq.s32.totalorder %s34, 5
      %p189 = por %p187, %p188
      %p191 = scmp.ne.s32.totalorder %s174, %s190
      %p192 = scmp.eq.s32.totalorder %s34, 0
      %p193 = por %p191, %p192
      %s194 = ssub.s32 %s36, %s43
      %p195 = scmp.eq.s32.totalorder %s194, 0
      %s197 = sadd.s32 %s196, 1
      %s198 = scalar_select %p195, %s196, %s197
      %p201 = pneg %p195
      %p202 = scmp.eq.s32.totalorder %s28, 5
      %p203 = por %p201, %p202
      %p204 = scmp.ne.s32.totalorder %s196, %s199
      %p205 = scmp.eq.s32.totalorder %s28, 0
      %p206 = por %p204, %p205
      %p207 = scmp.ne.s32.totalorder %s196, %s199
      %p208 = scmp.eq.s32.totalorder %s33, 5
      %p209 = por %p207, %p208
      %p210 = scmp.ne.s32.totalorder %s199, %s200
      %p211 = scmp.eq.s32.totalorder %s33, 0
      %p212 = por %p210, %p211
      %p213 = scmp.ne.s32.totalorder %s199, %s200
      %p214 = scmp.eq.s32.totalorder %s34, 5
      %p215 = por %p213, %p214
      %p217 = scmp.ne.s32.totalorder %s200, %s216
      %p218 = scmp.eq.s32.totalorder %s34, 0
      %p219 = por %p217, %p218
      %s220 = ssub.s32 %s36, %s43
      %p221 = scmp.eq.s32.totalorder %s220, 0
      %s223 = sadd.s32 %s222, 1
      %s224 = scalar_select %p221, %s222, %s223
      %p227 = pneg %p221
      %p228 = scmp.eq.s32.totalorder %s28, 5
      %p229 = por %p227, %p228
      %p230 = scmp.ne.s32.totalorder %s222, %s225
      %p231 = scmp.eq.s32.totalorder %s28, 0
      %p232 = por %p230, %p231
      %p233 = scmp.ne.s32.totalorder %s222, %s225
      %p234 = scmp.eq.s32.totalorder %s33, 5
      %p235 = por %p233, %p234
      %p236 = scmp.ne.s32.totalorder %s225, %s226
      %p237 = scmp.eq.s32.totalorder %s33, 0
      %p238 = por %p236, %p237
      %p239 = scmp.ne.s32.totalorder %s225, %s226
      %p240 = scmp.eq.s32.totalorder %s34, 5
      %p241 = por %p239, %p240
      %p243 = scmp.ne.s32.totalorder %s226, %s242
      %p244 = scmp.eq.s32.totalorder %s34, 0
      %p245 = por %p243, %p244
      %s246 = ssub.s32 %s36, %s43
      %p247 = scmp.eq.s32.totalorder %s246, 0
      %s249 = sadd.s32 %s248, 1
      %s250 = scalar_select %p247, %s248, %s249
      %p253 = pneg %p247
      %p254 = scmp.eq.s32.totalorder %s28, 5
      %p255 = por %p253, %p254
      %p256 = scmp.ne.s32.totalorder %s248, %s251
      %p257 = scmp.eq.s32.totalorder %s28, 0
      %p258 = por %p256, %p257
      %p259 = scmp.ne.s32.totalorder %s248, %s251
      %p260 = scmp.eq.s32.totalorder %s33, 5
      %p261 = por %p259, %p260
      %p262 = scmp.ne.s32.totalorder %s251, %s252
      %p263 = scmp.eq.s32.totalorder %s33, 0
      %p264 = por %p262, %p263
      %p265 = scmp.ne.s32.totalorder %s251, %s252
      %p266 = scmp.eq.s32.totalorder %s34, 5
      %p267 = por %p265, %p266
      %p269 = scmp.ne.s32.totalorder %s252, %s268
      %p270 = scmp.eq.s32.totalorder %s34, 0
      %p271 = por %p269, %p270
      %s272 = ssub.s32 %s36, %s43
      %p273 = scmp.eq.s32.totalorder %s272, 0
      %s275 = sadd.s32 %s274, 1
      %s276 = scalar_select %p273, %s274, %s275
      %p279 = pneg %p273
      %p280 = scmp.eq.s32.totalorder %s28, 5
      %p281 = por %p279, %p280
      %p282 = scmp.ne.s32.totalorder %s274, %s277
      %p283 = scmp.eq.s32.totalorder %s28, 0
      %p284 = por %p282, %p283
      %p285 = scmp.ne.s32.totalorder %s274, %s277
      %p286 = scmp.eq.s32.totalorder %s33, 5
      %p287 = por %p285, %p286
      %p288 = scmp.ne.s32.totalorder %s277, %s278
      %p289 = scmp.eq.s32.totalorder %s33, 0
      %p290 = por %p288, %p289
      %p291 = scmp.ne.s32.totalorder %s277, %s278
      %p292 = scmp.eq.s32.totalorder %s34, 5
      %p293 = por %p291, %p292
      %p295 = scmp.ne.s32.totalorder %s278, %s294
      %p296 = scmp.eq.s32.totalorder %s34, 0
      %p297 = por %p295, %p296
      %s298 = ssub.s32 %s36, %s43
      %p299 = scmp.eq.s32.totalorder %s298, 0
      %s301 = sadd.s32 %s300, 1
      %s302 = scalar_select %p299, %s300, %s301
      %p305 = pneg %p299
      %p306 = scmp.eq.s32.totalorder %s28, 5
      %p307 = por %p305, %p306
      %p308 = scmp.ne.s32.totalorder %s300, %s303
      %p309 = scmp.eq.s32.totalorder %s28, 0
      %p310 = por %p308, %p309
      %p311 = scmp.ne.s32.totalorder %s300, %s303
      %p312 = scmp.eq.s32.totalorder %s33, 5
      %p313 = por %p311, %p312
      %p314 = scmp.ne.s32.totalorder %s303, %s304
      %p315 = scmp.eq.s32.totalorder %s33, 0
      %p316 = por %p314, %p315
      %p317 = scmp.ne.s32.totalorder %s303, %s304
      %p318 = scmp.eq.s32.totalorder %s34, 5
      %p319 = por %p317, %p318
      %p321 = scmp.ne.s32.totalorder %s304, %s320
      %p322 = scmp.eq.s32.totalorder %s34, 0
      %p323 = por %p321, %p322
      %s324 = ssub.s32 %s36, %s43
      %p325 = scmp.eq.s32.totalorder %s324, 0
      %s327 = sadd.s32 %s326, 1
      %s328 = scalar_select %p325, %s326, %s327
      %p331 = pneg %p325
      %p332 = scmp.eq.s32.totalorder %s28, 5
      %p333 = por %p331, %p332
      %p334 = scmp.ne.s32.totalorder %s326, %s329
      %p335 = scmp.eq.s32.totalorder %s28, 0
      %p336 = por %p334, %p335
      %p337 = scmp.ne.s32.totalorder %s326, %s329
      %p338 = scmp.eq.s32.totalorder %s33, 5
      %p339 = por %p337, %p338
      %p340 = scmp.ne.s32.totalorder %s329, %s330
      %p341 = scmp.eq.s32.totalorder %s33, 0
      %p342 = por %p340, %p341
      %p343 = scmp.ne.s32.totalorder %s329, %s330
      %p344 = scmp.eq.s32.totalorder %s34, 5
      %p345 = por %p343, %p344
      %p347 = scmp.ne.s32.totalorder %s330, %s346
      %p348 = scmp.eq.s32.totalorder %s34, 0
      %p349 = por %p347, %p348
      %s350 = ssub.s32 %s36, %s43
      %p351 = scmp.eq.s32.totalorder %s350, 0
      %s353 = sadd.s32 %s352, 1
      %s354 = scalar_select %p351, %s352, %s353
      %p357 = pneg %p351
      %p358 = scmp.eq.s32.totalorder %s28, 5
      %p359 = por %p357, %p358
      %p360 = scmp.ne.s32.totalorder %s352, %s355
      %p361 = scmp.eq.s32.totalorder %s28, 0
      %p362 = por %p360, %p361
      %p363 = scmp.ne.s32.totalorder %s352, %s355
      %p364 = scmp.eq.s32.totalorder %s33, 5
      %p365 = por %p363, %p364
      %p366 = scmp.ne.s32.totalorder %s355, %s356
      %p367 = scmp.eq.s32.totalorder %s33, 0
      %p368 = por %p366, %p367
      %p369 = scmp.ne.s32.totalorder %s355, %s356
      %p370 = scmp.eq.s32.totalorder %s34, 5
      %p371 = por %p369, %p370
      %p373 = scmp.ne.s32.totalorder %s356, %s372
      %p374 = scmp.eq.s32.totalorder %s34, 0
      %p375 = por %p373, %p374
      %s376 = ssub.s32 %s36, %s43
      %p377 = scmp.eq.s32.totalorder %s376, 0
      %s379 = sadd.s32 %s378, 1
      %s380 = scalar_select %p377, %s378, %s379
      %p383 = pneg %p377
      %p384 = scmp.eq.s32.totalorder %s28, 5
      %p385 = por %p383, %p384
      %p386 = scmp.ne.s32.totalorder %s378, %s381
      %p387 = scmp.eq.s32.totalorder %s28, 0
      %p388 = por %p386, %p387
      %p389 = scmp.ne.s32.totalorder %s378, %s381
      %p390 = scmp.eq.s32.totalorder %s33, 5
      %p391 = por %p389, %p390
      %p392 = scmp.ne.s32.totalorder %s381, %s382
      %p393 = scmp.eq.s32.totalorder %s33, 0
      %p394 = por %p392, %p393
      %p395 = scmp.ne.s32.totalorder %s381, %s382
      %p396 = scmp.eq.s32.totalorder %s34, 5
      %p397 = por %p395, %p396
      %p399 = scmp.ne.s32.totalorder %s382, %s398
      %p400 = scmp.eq.s32.totalorder %s34, 0
      %p401 = por %p399, %p400
      %s402 = ssub.s32 %s36, %s43
      %p403 = scmp.eq.s32.totalorder %s402, 0
      %s405 = sadd.s32 %s404, 1
      %s406 = scalar_select %p403, %s404, %s405
      %p409 = pneg %p403
      %p410 = scmp.eq.s32.totalorder %s28, 5
      %p411 = por %p409, %p410
      %p412 = scmp.ne.s32.totalorder %s404, %s407
      %p413 = scmp.eq.s32.totalorder %s28, 0
      %p414 = por %p412, %p413
      %p415 = scmp.ne.s32.totalorder %s404, %s407
      %p416 = scmp.eq.s32.totalorder %s33, 5
      %p417 = por %p415, %p416
      %p418 = scmp.ne.s32.totalorder %s407, %s408
      %p419 = scmp.eq.s32.totalorder %s33, 0
      %p420 = por %p418, %p419
      %p421 = scmp.ne.s32.totalorder %s407, %s408
      %p422 = scmp.eq.s32.totalorder %s34, 5
      %p423 = por %p421, %p422
      %p425 = scmp.ne.s32.totalorder %s408, %s424
      %p426 = scmp.eq.s32.totalorder %s34, 0
      %p427 = por %p425, %p426
      %s429 = sadd.s32 %s428, 1
      %p432 = scmp.eq.s32.totalorder %s28, 5
      %p433 = scmp.ne.s32.totalorder %s428, %s430
      %p434 = scmp.eq.s32.totalorder %s28, 0
      %p435 = por %p433, %p434
      %p436 = scmp.ne.s32.totalorder %s428, %s430
      %p437 = scmp.eq.s32.totalorder %s33, 5
      %p438 = por %p436, %p437
      %p439 = scmp.ne.s32.totalorder %s430, %s431
      %p440 = scmp.eq.s32.totalorder %s33, 0
      %p441 = por %p439, %p440
      %p442 = scmp.ne.s32.totalorder %s430, %s431
      %p443 = scmp.eq.s32.totalorder %s34, 5
      %p444 = por %p442, %p443
      %p446 = scmp.ne.s32.totalorder %s431, %s445
      %p447 = scmp.eq.s32.totalorder %s34, 0
      %p448 = por %p446, %p447
      %s450 = sadd.s32 %s449, 1
      %p453 = scmp.eq.s32.totalorder %s28, 5
      %p454 = scmp.ne.s32.totalorder %s449, %s451
      %p455 = scmp.eq.s32.totalorder %s28, 0
      %p456 = por %p454, %p455
      %p457 = scmp.ne.s32.totalorder %s449, %s451
      %p458 = scmp.eq.s32.totalorder %s33, 5
      %p459 = por %p457, %p458
      %p460 = scmp.ne.s32.totalorder %s451, %s452
      %p461 = scmp.eq.s32.totalorder %s33, 0
      %p462 = por %p460, %p461
      %p463 = scmp.ne.s32.totalorder %s451, %s452
      %p464 = scmp.eq.s32.totalorder %s34, 5
      %p465 = por %p463, %p464
      %p467 = scmp.ne.s32.totalorder %s452, %s466
      %p468 = scmp.eq.s32.totalorder %s34, 0
      %p469 = por %p467, %p468
      %s471 = sadd.s32 %s470, 1
      %p474 = scmp.eq.s32.totalorder %s28, 5
      %p475 = scmp.ne.s32.totalorder %s470, %s472
      %p476 = scmp.eq.s32.totalorder %s28, 0
      %p477 = por %p475, %p476
      %p478 = scmp.ne.s32.totalorder %s470, %s472
      %p479 = scmp.eq.s32.totalorder %s33, 5
      %p480 = por %p478, %p479
      %p481 = scmp.ne.s32.totalorder %s472, %s473
      %p482 = scmp.eq.s32.totalorder %s33, 0
      %p483 = por %p481, %p482
      %p484 = scmp.ne.s32.totalorder %s472, %s473
      %p485 = scmp.eq.s32.totalorder %s34, 5
      %p486 = por %p484, %p485
      %p488 = scmp.ne.s32.totalorder %s473, %s487
      %p489 = scmp.eq.s32.totalorder %s34, 0
      %p490 = por %p488, %p489
      %s492 = sadd.s32 %s491, 1
      %p495 = scmp.eq.s32.totalorder %s28, 5
      %p496 = scmp.ne.s32.totalorder %s491, %s493
      %p497 = scmp.eq.s32.totalorder %s28, 0
      %p498 = por %p496, %p497
      %p499 = scmp.ne.s32.totalorder %s491, %s493
      %p500 = scmp.eq.s32.totalorder %s33, 5
      %p501 = por %p499, %p500
      %p502 = scmp.ne.s32.totalorder %s493, %s494
      %p503 = scmp.eq.s32.totalorder %s33, 0
      %p504 = por %p502, %p503
      %p505 = scmp.ne.s32.totalorder %s493, %s494
      %p506 = scmp.eq.s32.totalorder %s34, 5
      %p507 = por %p505, %p506
      %p509 = scmp.ne.s32.totalorder %s494, %s508
      %p510 = scmp.eq.s32.totalorder %s34, 0
      %p511 = por %p509, %p510
      %s512 = ssub.s32 %s35, %s47
      %p513 = scmp.eq.s32.totalorder %s512, 0
      %s515 = sadd.s32 %s514, 1
      %s516 = scalar_select %p513, %s514, %s515
      %p519 = pneg %p513
      %p520 = scmp.eq.s32.totalorder %s28, 5
      %p521 = por %p519, %p520
      %p522 = scmp.ne.s32.totalorder %s514, %s517
      %p523 = scmp.eq.s32.totalorder %s28, 0
      %p524 = por %p522, %p523
      %p525 = scmp.ne.s32.totalorder %s514, %s517
      %p526 = scmp.eq.s32.totalorder %s33, 5
      %p527 = por %p525, %p526
      %p528 = scmp.ne.s32.totalorder %s517, %s518
      %p529 = scmp.eq.s32.totalorder %s33, 0
      %p530 = por %p528, %p529
      %p531 = scmp.ne.s32.totalorder %s517, %s518
      %p532 = scmp.eq.s32.totalorder %s34, 5
      %p533 = por %p531, %p532
      %p535 = scmp.ne.s32.totalorder %s518, %s534
      %p536 = scmp.eq.s32.totalorder %s34, 0
      %p537 = por %p535, %p536
      %p538 = scmp.le.s32.totalorder 1, %s28
      %p539 = scmp.lt.s32.totalorder %s28, 7
      %p540 = pnand %p538, %p539
      %p541 = pneg %p540
      // Predicated region
      $region9: #{tpu_custom_call.1} parent=5 // pred_check
        _
      $region10: #{tpu_custom_call.1} parent=5 // pred_check_branch
        %543 = sbr.rel (%p540) target = $region12
      $region11: #{tpu_custom_call.1} parent=5 // pred_region
        %s544 = ssub.s32 %s28, 1
        // Predicated region
        $region13: #{tpu_custom_call.1} parent=11 // pred_check
          %p545 = pneg %p87
        $region14: #{tpu_custom_call.1} parent=11 // pred_check_branch
          %547 = sbr.rel (%p545) target = $region16
        $region15: #{tpu_custom_call.1} parent=11 // pred_region
          _
        $region16: #{tpu_custom_call.1} parent=11 // pred_fallthru
          _
        // Predicated region
        $region17: #{tpu_custom_call.1} parent=11 // pred_check
          %p548 = pneg %p108
        $region18: #{tpu_custom_call.1} parent=11 // pred_check_branch
          %550 = sbr.rel (%p548) target = $region20
        $region19: #{tpu_custom_call.1} parent=11 // pred_region
          _
        $region20: #{tpu_custom_call.1} parent=11 // pred_fallthru
          _
        // Predicated region
        $region21: #{tpu_custom_call.1} parent=11 // pred_check
          %p551 = pneg %p441
        $region22: #{tpu_custom_call.1} parent=11 // pred_check_branch
          %553 = sbr.rel (%p551) target = $region24
        $region23: #{tpu_custom_call.1} parent=11 // pred_region
          _
        $region24: #{tpu_custom_call.1} parent=11 // pred_fallthru
          _
        // Predicated region
        $region25: #{tpu_custom_call.1} parent=11 // pred_check
          %p554 = pneg %p462
        $region26: #{tpu_custom_call.1} parent=11 // pred_check_branch
          %556 = sbr.rel (%p554) target = $region28
        $region27: #{tpu_custom_call.1} parent=11 // pred_region
          _
        $region28: #{tpu_custom_call.1} parent=11 // pred_fallthru
          _
        // Predicated region
        $region29: #{tpu_custom_call.1} parent=11 // pred_check
          %p557 = pneg %p483
        $region30: #{tpu_custom_call.1} parent=11 // pred_check_branch
          %559 = sbr.rel (%p557) target = $region32
        $region31: #{tpu_custom_call.1} parent=11 // pred_region
          _
        $region32: #{tpu_custom_call.1} parent=11 // pred_fallthru
          _
        // Predicated region
        $region33: #{tpu_custom_call.1} parent=11 // pred_check
          %p560 = pneg %p504
        $region34: #{tpu_custom_call.1} parent=11 // pred_check_branch
          %562 = sbr.rel (%p560) target = $region36
        $region35: #{tpu_custom_call.1} parent=11 // pred_region
          _
        $region36: #{tpu_custom_call.1} parent=11 // pred_fallthru
          _
      $region12: #{tpu_custom_call.1} parent=5 // pred_fallthru
        _
      %p563 = scmp.lt.s32.totalorder %s28, 6
      // Predicated region
      $region37: #{tpu_custom_call.1} parent=5 // pred_check
        %p564 = pneg %p563
      $region38: #{tpu_custom_call.1} parent=5 // pred_check_branch
        %566 = sbr.rel (%p564) target = $region40
      $region39: #{tpu_custom_call.1} parent=5 // pred_region
        // Predicated region
        $region41: #{tpu_custom_call.1} parent=39 // pred_check
          %p567 = pneg %p60
        $region42: #{tpu_custom_call.1} parent=39 // pred_check_branch
          %569 = sbr.rel (%p567) target = $region44
        $region43: #{tpu_custom_call.1} parent=39 // pred_region
          %p570 = scmp.lt.s32.totalorder %s35, 1
          %s571 = scalar_select %p570, %s35, 1
          %s572 = smul.addr %s571, 8
          %s573 = scalar_lea.vmem %s0, %s572
        $region44: #{tpu_custom_call.1} parent=39 // pred_fallthru
          _
        // Predicated region
        $region45: #{tpu_custom_call.1} parent=39 // pred_check
          %p574 = pneg %p128
        $region46: #{tpu_custom_call.1} parent=39 // pred_check_branch
          %576 = sbr.rel (%p574) target = $region48
        $region47: #{tpu_custom_call.1} parent=39 // pred_region
          %p577 = scmp.lt.s32.totalorder %s36, 2
          %s578 = scalar_select %p577, %s36, 2
          %s579 = smul.addr %s578, 4
          %s580 = smul.addr %s579, 4
          %s581 = scalar_lea.vmem %s3, %s580
        $region48: #{tpu_custom_call.1} parent=39 // pred_fallthru
          _
        // Predicated region
        $region49: #{tpu_custom_call.1} parent=39 // pred_check
          %p582 = pneg %p154
        $region50: #{tpu_custom_call.1} parent=39 // pred_check_branch
          %584 = sbr.rel (%p582) target = $region52
        $region51: #{tpu_custom_call.1} parent=39 // pred_region
          %p585 = scmp.lt.s32.totalorder %s36, 2
          %s586 = scalar_select %p585, %s36, 2
          %s587 = scalar_lea.vmem %s4, %s586
        $region52: #{tpu_custom_call.1} parent=39 // pred_fallthru
          _
        // Predicated region
        $region53: #{tpu_custom_call.1} parent=39 // pred_check
          %p588 = pneg %p180
        $region54: #{tpu_custom_call.1} parent=39 // pred_check_branch
          %590 = sbr.rel (%p588) target = $region56
        $region55: #{tpu_custom_call.1} parent=39 // pred_region
          %p591 = scmp.lt.s32.totalorder %s36, 2
          %s592 = scalar_select %p591, %s36, 2
          %s593 = smul.addr %s592, 4
          %s594 = smul.addr %s593, 4
          %s595 = scalar_lea.vmem %s5, %s594
        $region56: #{tpu_custom_call.1} parent=39 // pred_fallthru
          _
        // Predicated region
        $region57: #{tpu_custom_call.1} parent=39 // pred_check
          %p596 = pneg %p206
        $region58: #{tpu_custom_call.1} parent=39 // pred_check_branch
          %598 = sbr.rel (%p596) target = $region60
        $region59: #{tpu_custom_call.1} parent=39 // pred_region
          %p599 = scmp.lt.s32.totalorder %s36, 2
          %s600 = scalar_select %p599, %s36, 2
          %s601 = scalar_lea.vmem %s6, %s600
        $region60: #{tpu_custom_call.1} parent=39 // pred_fallthru
          _
        // Predicated region
        $region61: #{tpu_custom_call.1} parent=39 // pred_check
          %p602 = pneg %p232
        $region62: #{tpu_custom_call.1} parent=39 // pred_check_branch
          %604 = sbr.rel (%p602) target = $region64
        $region63: #{tpu_custom_call.1} parent=39 // pred_region
          %p605 = scmp.lt.s32.totalorder %s36, 2
          %s606 = scalar_select %p605, %s36, 2
          %s607 = scalar_lea.vmem %s7, %s606
        $region64: #{tpu_custom_call.1} parent=39 // pred_fallthru
          _
        // Predicated region
        $region65: #{tpu_custom_call.1} parent=39 // pred_check
          %p608 = pneg %p258
        $region66: #{tpu_custom_call.1} parent=39 // pred_check_branch
          %610 = sbr.rel (%p608) target = $region68
        $region67: #{tpu_custom_call.1} parent=39 // pred_region
          %p611 = scmp.lt.s32.totalorder %s36, 2
          %s612 = scalar_select %p611, %s36, 2
          %s613 = scalar_lea.vmem %s8, %s612
        $region68: #{tpu_custom_call.1} parent=39 // pred_fallthru
          _
        // Predicated region
        $region69: #{tpu_custom_call.1} parent=39 // pred_check
          %p614 = pneg %p284
        $region70: #{tpu_custom_call.1} parent=39 // pred_check_branch
          %616 = sbr.rel (%p614) target = $region72
        $region71: #{tpu_custom_call.1} parent=39 // pred_region
          %p617 = scmp.lt.s32.totalorder %s36, 2
          %s618 = scalar_select %p617, %s36, 2
          %s619 = scalar_lea.vmem %s9, %s618
        $region72: #{tpu_custom_call.1} parent=39 // pred_fallthru
          _
        // Predicated region
        $region73: #{tpu_custom_call.1} parent=39 // pred_check
          %p620 = pneg %p310
        $region74: #{tpu_custom_call.1} parent=39 // pred_check_branch
          %622 = sbr.rel (%p620) target = $region76
        $region75: #{tpu_custom_call.1} parent=39 // pred_region
          %p623 = scmp.lt.s32.totalorder %s36, 2
          %s624 = scalar_select %p623, %s36, 2
          %s625 = scalar_lea.vmem %s10, %s624
        $region76: #{tpu_custom_call.1} parent=39 // pred_fallthru
          _
        // Predicated region
        $region77: #{tpu_custom_call.1} parent=39 // pred_check
          %p626 = pneg %p336
        $region78: #{tpu_custom_call.1} parent=39 // pred_check_branch
          %628 = sbr.rel (%p626) target = $region80
        $region79: #{tpu_custom_call.1} parent=39 // pred_region
          %p629 = scmp.lt.s32.totalorder %s36, 2
          %s630 = scalar_select %p629, %s36, 2
          %s631 = smul.addr %s630, 4
          %s632 = smul.addr %s631, 4
          %s633 = scalar_lea.vmem %s11, %s632
        $region80: #{tpu_custom_call.1} parent=39 // pred_fallthru
          _
        // Predicated region
        $region81: #{tpu_custom_call.1} parent=39 // pred_check
          %p634 = pneg %p362
        $region82: #{tpu_custom_call.1} parent=39 // pred_check_branch
          %636 = sbr.rel (%p634) target = $region84
        $region83: #{tpu_custom_call.1} parent=39 // pred_region
          %p637 = scmp.lt.s32.totalorder %s36, 2
          %s638 = scalar_select %p637, %s36, 2
          %s639 = scalar_lea.vmem %s12, %s638
        $region84: #{tpu_custom_call.1} parent=39 // pred_fallthru
          _
        // Predicated region
        $region85: #{tpu_custom_call.1} parent=39 // pred_check
          %p640 = pneg %p388
        $region86: #{tpu_custom_call.1} parent=39 // pred_check_branch
          %642 = sbr.rel (%p640) target = $region88
        $region87: #{tpu_custom_call.1} parent=39 // pred_region
          %p643 = scmp.lt.s32.totalorder %s36, 2
          %s644 = scalar_select %p643, %s36, 2
          %s645 = smul.addr %s644, 16
          %s646 = smul.addr %s645, 4
          %s647 = scalar_lea.vmem %s13, %s646
        $region88: #{tpu_custom_call.1} parent=39 // pred_fallthru
          _
        // Predicated region
        $region89: #{tpu_custom_call.1} parent=39 // pred_check
          %p648 = pneg %p414
        $region90: #{tpu_custom_call.1} parent=39 // pred_check_branch
          %650 = sbr.rel (%p648) target = $region92
        $region91: #{tpu_custom_call.1} parent=39 // pred_region
          %p651 = scmp.lt.s32.totalorder %s36, 2
          %s652 = scalar_select %p651, %s36, 2
          %s653 = scalar_lea.vmem %s14, %s652
        $region92: #{tpu_custom_call.1} parent=39 // pred_fallthru
          _
      $region40: #{tpu_custom_call.1} parent=5 // pred_fallthru
        _
      %p654 = scmp.le.s32.totalorder 1, %s28
      %p655 = scmp.lt.s32.totalorder %s28, 7
      %p656 = pnand %p654, %p655
      %p657 = pneg %p656
      // Predicated region
      $region93: #{tpu_custom_call.1} parent=5 // pred_check
        _
      $region94: #{tpu_custom_call.1} parent=5 // pred_check_branch
        %659 = sbr.rel (%p656) target = $region96
      $region95: #{tpu_custom_call.1} parent=5 // pred_region
        %s660 = ssub.s32 %s28, 1
        %p661 = scmp.lt.s32.totalorder %s37, 1
        %s662 = scalar_select %p661, %s37, 1
        %s663 = smul.addr %s662, 8
        %s664 = scalar_lea.vmem %s0, %s663
        %p665 = pneg %p66
        %p666 = pneg %p63
        %p667 = pneg %p87
        %p668 = pneg %p84
        %p669 = pneg %p108
        %p670 = pneg %p105
        %p671 = scmp.lt.s32.totalorder %s38, 2
        %s672 = scalar_select %p671, %s38, 2
        %s673 = smul.addr %s672, 4
        %s674 = smul.addr %s673, 4
        %s675 = scalar_lea.vmem %s3, %s674
        %p676 = pneg %p134
        %p677 = pneg %p131
        %p678 = scmp.lt.s32.totalorder %s38, 2
        %s679 = scalar_select %p678, %s38, 2
        %s680 = scalar_lea.vmem %s4, %s679
        %p681 = pneg %p160
        %p682 = pneg %p157
        %p683 = scmp.lt.s32.totalorder %s38, 2
        %s684 = scalar_select %p683, %s38, 2
        %s685 = smul.addr %s684, 4
        %s686 = smul.addr %s685, 4
        %s687 = scalar_lea.vmem %s5, %s686
        %p688 = pneg %p186
        %p689 = pneg %p183
        %p690 = scmp.lt.s32.totalorder %s38, 2
        %s691 = scalar_select %p690, %s38, 2
        %s692 = scalar_lea.vmem %s6, %s691
        %p693 = pneg %p212
        %p694 = pneg %p209
        %p695 = scmp.lt.s32.totalorder %s38, 2
        %s696 = scalar_select %p695, %s38, 2
        %s697 = scalar_lea.vmem %s7, %s696
        %p698 = pneg %p238
        %p699 = pneg %p235
        %p700 = scmp.lt.s32.totalorder %s38, 2
        %s701 = scalar_select %p700, %s38, 2
        %s702 = scalar_lea.vmem %s8, %s701
        %p703 = pneg %p264
        %p704 = pneg %p261
        %p705 = scmp.lt.s32.totalorder %s38, 2
        %s706 = scalar_select %p705, %s38, 2
        %s707 = scalar_lea.vmem %s9, %s706
        %p708 = pneg %p290
        %p709 = pneg %p287
        %p710 = scmp.lt.s32.totalorder %s38, 2
        %s711 = scalar_select %p710, %s38, 2
        %s712 = scalar_lea.vmem %s10, %s711
        %p713 = pneg %p316
        %p714 = pneg %p313
        %p715 = scmp.lt.s32.totalorder %s38, 2
        %s716 = scalar_select %p715, %s38, 2
        %s717 = smul.addr %s716, 4
        %s718 = smul.addr %s717, 4
        %s719 = scalar_lea.vmem %s11, %s718
        %p720 = pneg %p342
        %p721 = pneg %p339
        %p722 = scmp.lt.s32.totalorder %s38, 2
        %s723 = scalar_select %p722, %s38, 2
        %s724 = scalar_lea.vmem %s12, %s723
        %p725 = pneg %p368
        %p726 = pneg %p365
        %p727 = scmp.lt.s32.totalorder %s38, 2
        %s728 = scalar_select %p727, %s38, 2
        %s729 = smul.addr %s728, 16
        %s730 = smul.addr %s729, 4
        %s731 = scalar_lea.vmem %s13, %s730
        %p732 = pneg %p394
        %p733 = pneg %p391
        %p734 = scmp.lt.s32.totalorder %s38, 2
        %s735 = scalar_select %p734, %s38, 2
        %s736 = scalar_lea.vmem %s14, %s735
        %p737 = pneg %p420
        %p738 = pneg %p417
        %p739 = pneg %p441
        %p740 = pneg %p438
        %p741 = pneg %p462
        %p742 = pneg %p459
        %p743 = pneg %p483
        %p744 = pneg %p480
        %p745 = pneg %p504
        %p746 = pneg %p501
        %p747 = pneg %p530
        %p748 = pneg %p527
        %s749 = sand.u32 %s517, 1
        %s750 = scalar_lea.sflag [#allocation5], %s749
        %s751 = sand.u32 %s517, 1
        %s752 = smul.addr %s751, 8
        %s753 = scalar_lea.vmem [#allocation4], %s752
        %p754 = scmp.lt.s32.totalorder %s37, 1
        %s755 = scalar_select %p754, %s37, 1
        %s756 = smul.addr %s755, 8
        %s757 = scalar_lea.vmem %s0, %s756
        %p758 = scmp.lt.s32.totalorder %s38, 2
        %s759 = scalar_select %p758, %s38, 2
        %s760 = smul.addr %s759, 4
        %s761 = smul.addr %s760, 4
        %s762 = scalar_lea.vmem %s3, %s761
        %p763 = scmp.lt.s32.totalorder %s38, 2
        %s764 = scalar_select %p763, %s38, 2
        %s765 = scalar_lea.vmem %s4, %s764
        %p766 = scmp.lt.s32.totalorder %s38, 2
        %s767 = scalar_select %p766, %s38, 2
        %s768 = smul.addr %s767, 4
        %s769 = smul.addr %s768, 4
        %s770 = scalar_lea.vmem %s5, %s769
        %p771 = scmp.lt.s32.totalorder %s38, 2
        %s772 = scalar_select %p771, %s38, 2
        %s773 = scalar_lea.vmem %s6, %s772
        %p774 = scmp.lt.s32.totalorder %s38, 2
        %s775 = scalar_select %p774, %s38, 2
        %s776 = scalar_lea.vmem %s7, %s775
        %p777 = scmp.lt.s32.totalorder %s38, 2
        %s778 = scalar_select %p777, %s38, 2
        %s779 = scalar_lea.vmem %s8, %s778
        %p780 = scmp.lt.s32.totalorder %s38, 2
        %s781 = scalar_select %p780, %s38, 2
        %s782 = scalar_lea.vmem %s9, %s781
        %p783 = scmp.lt.s32.totalorder %s38, 2
        %s784 = scalar_select %p783, %s38, 2
        %s785 = scalar_lea.vmem %s10, %s784
        %p786 = scmp.lt.s32.totalorder %s38, 2
        %s787 = scalar_select %p786, %s38, 2
        %s788 = smul.addr %s787, 4
        %s789 = smul.addr %s788, 4
        %s790 = scalar_lea.vmem %s11, %s789
        %p791 = scmp.lt.s32.totalorder %s38, 2
        %s792 = scalar_select %p791, %s38, 2
        %s793 = scalar_lea.vmem %s12, %s792
        %p794 = scmp.lt.s32.totalorder %s38, 2
        %s795 = scalar_select %p794, %s38, 2
        %s796 = smul.addr %s795, 16
        %s797 = smul.addr %s796, 4
        %s798 = scalar_lea.vmem %s13, %s797
        %p799 = scmp.lt.s32.totalorder %s38, 2
        %s800 = scalar_select %p799, %s38, 2
        %s801 = scalar_lea.vmem %s14, %s800
        %p803 = scmp.eq.s32.totalorder %s38, 0
        // Predicated region
        $region97: #{tpu_custom_call.1} parent=95 // pred_check
          %p804 = pneg %p803
        $region98: #{tpu_custom_call.1} parent=95 // pred_check_branch
          %806 = sbr.rel (%p804) target = $region100
        $region99: #{tpu_custom_call.1} parent=95 // pred_region
          %v807 = vld [vmem:[%s757] sm:$0xff]
          %v808 = vpack.c.bf16 %v807, %v807
          %v809 = vld [vmem:[%s2] sm:$0xf]
          %v810 = vld [vmem:[%s2 + $0x4] sm:$0xf]
          %v811 = vld [vmem:[%s2 + $0x8] sm:$0xf]
          %v812 = vld [vmem:[%s2 + $0xc] sm:$0xf]
          %v813 = vld [vmem:[%s2 + $0x10] sm:$0xf]
          %v814 = vld [vmem:[%s2 + $0x14] sm:$0xf]
          %v815 = vld [vmem:[%s2 + $0x18] sm:$0xf]
          %v816 = vld [vmem:[%s2 + $0x1c] sm:$0xf]
          %v817 = vld [vmem:[%s2 + $0x20] sm:$0xf]
          %v818 = vld [vmem:[%s2 + $0x24] sm:$0xf]
          %v819 = vld [vmem:[%s2 + $0x28] sm:$0xf]
          %v820 = vld [vmem:[%s2 + $0x2c] sm:$0xf]
          %v821 = vld [vmem:[%s2 + $0x30] sm:$0xf]
          %v822 = vld [vmem:[%s2 + $0x34] sm:$0xf]
          %v823 = vld [vmem:[%s2 + $0x38] sm:$0xf]
          %v824 = vld [vmem:[%s2 + $0x3c] sm:$0xf]
          %v825 = vld [vmem:[%s1] sm:$0xff]
          %v842 = vunpack.c.l.b16 %v809
          %v843 = vunpack.c.l.b16 %v810
          %v844 = vunpack.c.l.b16 %v811
          %v845 = vunpack.c.l.b16 %v812
          %v846 = vunpack.c.l.b16 %v813
          %v847 = vunpack.c.l.b16 %v814
          %v848 = vunpack.c.l.b16 %v815
          %v849 = vunpack.c.l.b16 %v816
          %v850 = vunpack.c.l.b16 %v817
          %v851 = vunpack.c.l.b16 %v818
          %v852 = vunpack.c.l.b16 %v819
          %v853 = vunpack.c.l.b16 %v820
          %v854 = vunpack.c.l.b16 %v821
          %v855 = vunpack.c.l.b16 %v822
          %v856 = vunpack.c.l.b16 %v823
          %v857 = vunpack.c.l.b16 %v824
          %v858 = vpack.c.b16 %v843, %v842
          %v859 = vpack.c.b16 %v845, %v844
          %v860 = vpack.c.b16 %v847, %v846
          %v861 = vpack.c.b16 %v849, %v848
          %v862 = vpack.c.b16 %v851, %v850
          %v863 = vpack.c.b16 %v853, %v852
          %v864 = vpack.c.b16 %v855, %v854
          %v865 = vpack.c.b16 %v857, %v856
          %874 = vmatpush.bf16.msra.mxu0 %v865
          %875 = vmatpush.bf16.msra.mxu0 %v864
          %876 = vmatpush.bf16.msra.mxu0 %v863
          %877 = vmatpush.bf16.msra.mxu0 %v862
          %878 = vmatpush.bf16.msra.mxu0 %v861
          %879 = vmatpush.bf16.msra.mxu0 %v860
          %880 = vmatpush.bf16.msra.mxu0 %v859
          %881 = vmatpush.bf16.msra.mxu0 %v858
          %882 = vmatmul.bf16.gmra.mxu0 %v808
          %v883 = vpop.f32.mrf.mxu0
          %v884 = vadd.f32 %v825, %v883
          %v885 = vpop.f32.mrf.mxu0
          %886 = vdwg.mxu0
          %vm887 = vcmask 261120
          %888 = vst.msk [vmem:[#allocation2] sm:$0xff] %vm887, %v884
        $region100: #{tpu_custom_call.1} parent=95 // pred_fallthru
          _
        %v889 = vlaneseq
        %v890 = vshrl.u32 %v889, 7
        %v891 = vlaneseq
        %v892 = vand.u32 %v891, 127
        %vm893 = vcmp.gt.s32.totalorder %v892, %v890
        %v894 = vsel %vm893, -1e+30, 0.0
        %v895 = vld [vmem:[#allocation2] sm:$0xff]
        %v896 = vld [vmem:[%s776] sm:$0x1]
        %v897 = vld [vmem:[%s779] sm:$0x1]
        %vm898 = vcmask 261120
        %v899 = vsel %vm898, %v895, 0.0
        %900 = vadd.xlane.f32.xlu0 %v899
        %v901 = vpop.xlane.xlu0 %900
        %v902 = vrcp.pop 32.0
        %v903 = vmul.f32 32.0, %v902
        %v904 = vsub.f32 1.0, %v903
        %v905 = vmul.f32 %v902, %v904
        %v906 = vadd.f32 %v902, %v905
        %vm907 = vweird.f32 %v902
        %v908 = vsel %vm907, %v902, %v906
        %v909 = vmul.f32 %v901, %v908
        %v910 = vsub.f32 %v895, %v909
        %v911 = vmul.f32 %v910, %v910
        %v912 = vsel %vm898, %v911, 0.0
        %913 = vadd.xlane.f32.xlu0 %v912
        %v914 = vpop.xlane.xlu0 %913
        %v915 = vmul.f32 %v914, %v908
        %v916 = vadd.f32 %v915, 1e-05
        %v917 = vrsqrt.pop %v916
        %v918 = vmul.f32 %v917, %v916
        %v919 = vmul.f32 %v918, %v917
        %v920 = vmul.f32 0.5, %v919
        %v921 = vsub.f32 1.5, %v920
        %v922 = vmul.f32 %v917, %v921
        %vm923 = vweird.f32 %v916
        %vm924 = vweird.f32 %v917
        %vm925 = vmor %vm923, %vm924
        %v926 = vsel %vm925, %v917, %v922
        %v927 = vmul.f32 %v910, %v926
        %v929 = vperm.slane %v896, 0
        %v931 = vmul.f32 %v927, %v929
        %v933 = vperm.slane %v897, 0
        %v935 = vadd.f32 %v931, %v933
        %v936 = vpack.c.bf16 %v935, %v935
        %v937 = vld [vmem:[%s762] sm:$0xf]
        %v938 = vld [vmem:[%s762 + $0x4] sm:$0xf]
        %v939 = vld [vmem:[%s762 + $0x8] sm:$0xf]
        %v940 = vld [vmem:[%s762 + $0xc] sm:$0xf]
        %v941 = vld [vmem:[%s765] sm:$0x1]
        %v943 = vperm.slane %v941, 0
        %v949 = vunpack.c.l.b16 %v937
        %v950 = vunpack.c.l.b16 %v938
        %v951 = vunpack.c.l.b16 %v939
        %v952 = vunpack.c.l.b16 %v940
        %v953 = vpack.c.b16 %v950, %v949
        %v954 = vpack.c.b16 %v952, %v951
        %v958 = vsel %vm898, %v936, 0
        %960 = vmatpush.bf16.msra.mxu0 0
        %961 = vmatpush.bf16.msra.mxu0 0
        %962 = vmatpush.bf16.msra.mxu0 0
        %963 = vmatpush.bf16.msra.mxu0 0
        %964 = vmatpush.bf16.msra.mxu0 0
        %965 = vmatpush.bf16.msra.mxu0 0
        %966 = vmatpush.bf16.msra.mxu0 %v954
        %967 = vmatpush.bf16.msra.mxu0 %v953
        %968 = vmatmul.bf16.gmra.mxu0 %v958
        %v969 = vpop.f32.mrf.mxu0
        %v970 = vadd.f32 %v943, %v969
        %v971 = vpop.f32.mrf.mxu0
        %972 = vdwg.mxu0
        %v973 = vpack.c.bf16 %v970, %v970
        %v975 = vunpack.c.l.b16 %v973
        %v976 = vpack.c.b16 %v975, %v975
        %977 = vrot.lane.b32.xlu0 %v976, 96
        %v978 = vpop.permute.xlu0 %977
        %vm979 = vcmask 64512
        %v981 = vsel %vm979, %v973, 0
        %v984 = vsel %vm979, %v978, 0
        %986 = vmatpush.bf16.xpose.msra.mxu0 0
        %987 = vmatpush.bf16.xpose.msra.mxu0 0
        %988 = vmatpush.bf16.xpose.msra.mxu0 0
        %989 = vmatpush.bf16.xpose.msra.mxu0 0
        %990 = vmatpush.bf16.xpose.msra.mxu0 0
        %991 = vmatpush.bf16.xpose.msra.mxu0 0
        %992 = vmatpush.bf16.xpose.msra.mxu0 0
        %993 = vmatpush.bf16.xpose.msra.mxu0 %v984
        %994 = vmatmul.bf16.gmra.mxu0 %v981
        %v995 = vpop.f32.mrf.mxu0
        %v996 = vadd.f32 %v894, %v995
        %v997 = vpop.f32.mrf.mxu0
        %998 = vdwg.mxu0
        %v999 = vsel %vm979, %v996, -inf
        %1000 = vmax.xlane.f32.xlu0 %v999
        %v1001 = vpop.xlane.xlu0 %1000
        %v1002 = vsub.f32 %v996, %v1001
        %v1003 = vmul.f32 %v1002, 1.442695
        %v1004 = vpow.pop %v1003
        %v1005 = vsel %vm979, %v1004, 0.0
        %1006 = vadd.xlane.f32.xlu0 %v1005
        %v1007 = vpop.xlane.xlu0 %1006
        %v1008 = vrcp.pop %v1007
        %v1009 = vmul.f32 %v1004, %v1008
        %v1010 = vpack.c.bf16 %v1009, %v1009
        %1011 = vrot.lane.b32.xlu0 %v976, 64
        %v1012 = vpop.permute.xlu0 %1011
        %v1014 = vsel %vm979, %v1010, 0
        %vm1016 = vcmask 1043456
        %v1018 = vsel %vm1016, %v1012, 0
        %1020 = vmatpush.bf16.msra.mxu0 0
        %1021 = vmatpush.bf16.msra.mxu0 0
        %1022 = vmatpush.bf16.msra.mxu0 0
        %1023 = vmatpush.bf16.msra.mxu0 0
        %1024 = vmatpush.bf16.msra.mxu0 0
        %1025 = vmatpush.bf16.msra.mxu0 0
        %1026 = vmatpush.bf16.msra.mxu0 0
        %1027 = vmatpush.bf16.msra.mxu0 %v1018
        %1028 = vmatmul.bf16.gmra.mxu0 %v1014
        %v1029 = vpop.f32.mrf.mxu0
        %v1030 = vadd.f32 0.0, %v1029
        %v1031 = vpop.f32.mrf.mxu0
        %1032 = vdwg.mxu0
        %1033 = vst.msk [vmem:[#allocation3] sm:$0xff] %vm979, %v1030
        %1034 = vrot.lane.b32.xlu0 %v976, 120
        %v1035 = vpop.permute.xlu0 %1034
        %1036 = vrot.lane.b32.xlu0 %v976, 88
        %v1037 = vpop.permute.xlu0 %1036
        %v1039 = vsel %vm979, %v1035, 0
        %v1042 = vsel %vm979, %v1037, 0
        %1044 = vmatpush.bf16.xpose.msra.mxu0 0
        %1045 = vmatpush.bf16.xpose.msra.mxu0 0
        %1046 = vmatpush.bf16.xpose.msra.mxu0 0
        %1047 = vmatpush.bf16.xpose.msra.mxu0 0
        %1048 = vmatpush.bf16.xpose.msra.mxu0 0
        %1049 = vmatpush.bf16.xpose.msra.mxu0 0
        %1050 = vmatpush.bf16.xpose.msra.mxu0 0
        %1051 = vmatpush.bf16.xpose.msra.mxu0 %v1042
        %1052 = vmatmul.bf16.gmra.mxu0 %v1039
        %v1053 = vpop.f32.mrf.mxu0
        %v1054 = vadd.f32 %v894, %v1053
        %v1055 = vpop.f32.mrf.mxu0
        %1056 = vdwg.mxu0
        %v1057 = vsel %vm979, %v1054, -inf
        %1058 = vmax.xlane.f32.xlu0 %v1057
        %v1059 = vpop.xlane.xlu0 %1058
        %v1060 = vsub.f32 %v1054, %v1059
        %v1061 = vmul.f32 %v1060, 1.442695
        %v1062 = vpow.pop %v1061
        %v1063 = vsel %vm979, %v1062, 0.0
        %1064 = vadd.xlane.f32.xlu0 %v1063
        %v1065 = vpop.xlane.xlu0 %1064
        %v1066 = vrcp.pop %v1065
        %v1067 = vmul.f32 %v1062, %v1066
        %v1068 = vpack.c.bf16 %v1067, %v1067
        %1069 = vrot.lane.b32.xlu0 %v976, 56
        %v1070 = vpop.permute.xlu0 %1069
        %v1072 = vsel %vm979, %v1068, 0
        %v1075 = vsel %vm1016, %v1070, 0
        %1077 = vmatpush.bf16.msra.mxu0 0
        %1078 = vmatpush.bf16.msra.mxu0 0
        %1079 = vmatpush.bf16.msra.mxu0 0
        %1080 = vmatpush.bf16.msra.mxu0 0
        %1081 = vmatpush.bf16.msra.mxu0 0
        %1082 = vmatpush.bf16.msra.mxu0 0
        %1083 = vmatpush.bf16.msra.mxu0 0
        %1084 = vmatpush.bf16.msra.mxu0 %v1075
        %1085 = vmatmul.bf16.gmra.mxu0 %v1072
        %v1086 = vpop.f32.mrf.mxu0
        %v1087 = vadd.f32 0.0, %v1086
        %v1088 = vpop.f32.mrf.mxu0
        %1089 = vdwg.mxu0
        %1091 = vrot.lane.b32.xlu0 %v1087, 8
        %v1092 = vpop.permute.xlu0 %1091
        %vm1094 = vcmask 130112
        %1095 = vst.msk [vmem:[#allocation3] sm:$0xff] %vm1094, %v1092
        %1096 = vrot.lane.b32.xlu0 %v976, 112
        %v1097 = vpop.permute.xlu0 %1096
        %1098 = vrot.lane.b32.xlu0 %v976, 80
        %v1099 = vpop.permute.xlu0 %1098
        %v1101 = vsel %vm979, %v1097, 0
        %v1104 = vsel %vm979, %v1099, 0
        %1106 = vmatpush.bf16.xpose.msra.mxu0 0
        %1107 = vmatpush.bf16.xpose.msra.mxu0 0
        %1108 = vmatpush.bf16.xpose.msra.mxu0 0
        %1109 = vmatpush.bf16.xpose.msra.mxu0 0
        %1110 = vmatpush.bf16.xpose.msra.mxu0 0
        %1111 = vmatpush.bf16.xpose.msra.mxu0 0
        %1112 = vmatpush.bf16.xpose.msra.mxu0 0
        %1113 = vmatpush.bf16.xpose.msra.mxu0 %v1104
        %1114 = vmatmul.bf16.gmra.mxu0 %v1101
        %v1115 = vpop.f32.mrf.mxu0
        %v1116 = vadd.f32 %v894, %v1115
        %v1117 = vpop.f32.mrf.mxu0
        %1118 = vdwg.mxu0
        %v1119 = vsel %vm979, %v1116, -inf
        %1120 = vmax.xlane.f32.xlu0 %v1119
        %v1121 = vpop.xlane.xlu0 %1120
        %v1122 = vsub.f32 %v1116, %v1121
        %v1123 = vmul.f32 %v1122, 1.442695
        %v1124 = vpow.pop %v1123
        %v1125 = vsel %vm979, %v1124, 0.0
        %1126 = vadd.xlane.f32.xlu0 %v1125
        %v1127 = vpop.xlane.xlu0 %1126
        %v1128 = vrcp.pop %v1127
        %v1129 = vmul.f32 %v1124, %v1128
        %v1130 = vpack.c.bf16 %v1129, %v1129
        %1131 = vrot.lane.b32.xlu0 %v976, 48
        %v1132 = vpop.permute.xlu0 %1131
        %v1134 = vsel %vm979, %v1130, 0
        %v1137 = vsel %vm1016, %v1132, 0
        %1139 = vmatpush.bf16.msra.mxu0 0
        %1140 = vmatpush.bf16.msra.mxu0 0
        %1141 = vmatpush.bf16.msra.mxu0 0
        %1142 = vmatpush.bf16.msra.mxu0 0
        %1143 = vmatpush.bf16.msra.mxu0 0
        %1144 = vmatpush.bf16.msra.mxu0 0
        %1145 = vmatpush.bf16.msra.mxu0 0
        %1146 = vmatpush.bf16.msra.mxu0 %v1137
        %1147 = vmatmul.bf16.gmra.mxu0 %v1134
        %v1148 = vpop.f32.mrf.mxu0
        %v1149 = vadd.f32 0.0, %v1148
        %v1150 = vpop.f32.mrf.mxu0
        %1151 = vdwg.mxu0
        %1153 = vrot.lane.b32.xlu0 %v1149, 16
        %v1154 = vpop.permute.xlu0 %1153
        %vm1156 = vcmask 195712
        %1157 = vst.msk [vmem:[#allocation3] sm:$0xff] %vm1156, %v1154
        %1158 = vrot.lane.b32.xlu0 %v976, 104
        %v1159 = vpop.permute.xlu0 %1158
        %1160 = vrot.lane.b32.xlu0 %v976, 72
        %v1161 = vpop.permute.xlu0 %1160
        %v1163 = vsel %vm979, %v1159, 0
        %v1166 = vsel %vm979, %v1161, 0
        %1168 = vmatpush.bf16.xpose.msra.mxu0 0
        %1169 = vmatpush.bf16.xpose.msra.mxu0 0
        %1170 = vmatpush.bf16.xpose.msra.mxu0 0
        %1171 = vmatpush.bf16.xpose.msra.mxu0 0
        %1172 = vmatpush.bf16.xpose.msra.mxu0 0
        %1173 = vmatpush.bf16.xpose.msra.mxu0 0
        %1174 = vmatpush.bf16.xpose.msra.mxu0 0
        %1175 = vmatpush.bf16.xpose.msra.mxu0 %v1166
        %1176 = vmatmul.bf16.gmra.mxu0 %v1163
        %v1177 = vpop.f32.mrf.mxu0
        %v1178 = vadd.f32 %v894, %v1177
        %v1179 = vpop.f32.mrf.mxu0
        %1180 = vdwg.mxu0
        %v1181 = vsel %vm979, %v1178, -inf
        %1182 = vmax.xlane.f32.xlu0 %v1181
        %v1183 = vpop.xlane.xlu0 %1182
        %v1184 = vsub.f32 %v1178, %v1183
        %v1185 = vmul.f32 %v1184, 1.442695
        %v1186 = vpow.pop %v1185
        %v1187 = vsel %vm979, %v1186, 0.0
        %1188 = vadd.xlane.f32.xlu0 %v1187
        %v1189 = vpop.xlane.xlu0 %1188
        %v1190 = vrcp.pop %v1189
        %v1191 = vmul.f32 %v1186, %v1190
        %v1192 = vpack.c.bf16 %v1191, %v1191
        %1193 = vrot.lane.b32.xlu0 %v976, 40
        %v1194 = vpop.permute.xlu0 %1193
        %v1196 = vsel %vm979, %v1192, 0
        %v1199 = vsel %vm1016, %v1194, 0
        %1201 = vmatpush.bf16.msra.mxu0 0
        %1202 = vmatpush.bf16.msra.mxu0 0
        %1203 = vmatpush.bf16.msra.mxu0 0
        %1204 = vmatpush.bf16.msra.mxu0 0
        %1205 = vmatpush.bf16.msra.mxu0 0
        %1206 = vmatpush.bf16.msra.mxu0 0
        %1207 = vmatpush.bf16.msra.mxu0 0
        %1208 = vmatpush.bf16.msra.mxu0 %v1199
        %1209 = vmatmul.bf16.gmra.mxu0 %v1196
        %v1210 = vpop.f32.mrf.mxu0
        %v1211 = vadd.f32 0.0, %v1210
        %v1212 = vpop.f32.mrf.mxu0
        %1213 = vdwg.mxu0
        %1215 = vrot.lane.b32.xlu0 %v1211, 24
        %v1216 = vpop.permute.xlu0 %1215
        %vm1218 = vcmask 261312
        %1219 = vst.msk [vmem:[#allocation3] sm:$0xff] %vm1218, %v1216
        %v1220 = vld [vmem:[#allocation3] sm:$0xff]
        %v1221 = vpack.c.bf16 %v1220, %v1220
        %v1222 = vld [vmem:[%s770] sm:$0xf]
        %v1223 = vld [vmem:[%s770 + $0x4] sm:$0xf]
        %v1224 = vld [vmem:[%s770 + $0x8] sm:$0xf]
        %v1225 = vld [vmem:[%s770 + $0xc] sm:$0xf]
        %v1226 = vld [vmem:[%s773] sm:$0x1]
        %v1228 = vperm.slane %v1226, 0
        %v1234 = vunpack.c.l.b16 %v1222
        %v1235 = vunpack.c.l.b16 %v1223
        %v1236 = vunpack.c.l.b16 %v1224
        %v1237 = vunpack.c.l.b16 %v1225
        %v1238 = vpack.c.b16 %v1235, %v1234
        %v1239 = vpack.c.b16 %v1237, %v1236
        %v1243 = vsel %vm898, %v1221, 0
        %1245 = vmatpush.bf16.msra.mxu0 0
        %1246 = vmatpush.bf16.msra.mxu0 0
        %1247 = vmatpush.bf16.msra.mxu0 0
        %1248 = vmatpush.bf16.msra.mxu0 0
        %1249 = vmatpush.bf16.msra.mxu0 0
        %1250 = vmatpush.bf16.msra.mxu0 0
        %1251 = vmatpush.bf16.msra.mxu0 %v1239
        %1252 = vmatpush.bf16.msra.mxu0 %v1238
        %1253 = vmatmul.bf16.gmra.mxu0 %v1243
        %v1254 = vpop.f32.mrf.mxu0
        %v1255 = vadd.f32 %v1228, %v1254
        %v1256 = vpop.f32.mrf.mxu0
        %1257 = vdwg.mxu0
        %v1258 = vadd.f32 %v935, %v1255
        %v1259 = vld [vmem:[%s782] sm:$0x1]
        %v1260 = vld [vmem:[%s785] sm:$0x1]
        %v1261 = vsel %vm898, %v1258, 0.0
        %1262 = vadd.xlane.f32.xlu0 %v1261
        %v1263 = vpop.xlane.xlu0 %1262
        %v1264 = vmul.f32 %v1263, %v908
        %v1265 = vsub.f32 %v1258, %v1264
        %v1266 = vmul.f32 %v1265, %v1265
        %v1267 = vsel %vm898, %v1266, 0.0
        %1268 = vadd.xlane.f32.xlu0 %v1267
        %v1269 = vpop.xlane.xlu0 %1268
        %v1270 = vmul.f32 %v1269, %v908
        %v1271 = vadd.f32 %v1270, 1e-05
        %v1272 = vrsqrt.pop %v1271
        %v1273 = vmul.f32 %v1272, %v1271
        %v1274 = vmul.f32 %v1273, %v1272
        %v1275 = vmul.f32 0.5, %v1274
        %v1276 = vsub.f32 1.5, %v1275
        %v1277 = vmul.f32 %v1272, %v1276
        %vm1278 = vweird.f32 %v1271
        %vm1279 = vweird.f32 %v1272
        %vm1280 = vmor %vm1278, %vm1279
        %v1281 = vsel %vm1280, %v1272, %v1277
        %v1282 = vmul.f32 %v1265, %v1281
        %v1284 = vperm.slane %v1259, 0
        %v1286 = vmul.f32 %v1282, %v1284
        %v1288 = vperm.slane %v1260, 0
        %v1290 = vadd.f32 %v1286, %v1288
        %v1291 = vpack.c.bf16 %v1290, %v1290
        %v1292 = vld [vmem:[%s790] sm:$0xf]
        %v1293 = vld [vmem:[%s790 + $0x4] sm:$0xf]
        %v1294 = vld [vmem:[%s790 + $0x8] sm:$0xf]
        %v1295 = vld [vmem:[%s790 + $0xc] sm:$0xf]
        %v1296 = vld [vmem:[%s793] sm:$0x1]
        %v1298 = vperm.slane %v1296, 0
        %v1304 = vunpack.c.l.b16 %v1292
        %v1305 = vunpack.c.l.b16 %v1293
        %v1306 = vunpack.c.l.b16 %v1294
        %v1307 = vunpack.c.l.b16 %v1295
        %v1308 = vpack.c.b16 %v1305, %v1304
        %v1309 = vpack.c.b16 %v1307, %v1306
        %v1313 = vsel %vm898, %v1291, 0
        %1315 = vmatpush.bf16.msra.mxu0 0
        %1316 = vmatpush.bf16.msra.mxu0 0
        %1317 = vmatpush.bf16.msra.mxu0 0
        %1318 = vmatpush.bf16.msra.mxu0 0
        %1319 = vmatpush.bf16.msra.mxu0 0
        %1320 = vmatpush.bf16.msra.mxu0 0
        %1321 = vmatpush.bf16.msra.mxu0 %v1309
        %1322 = vmatpush.bf16.msra.mxu0 %v1308
        %1323 = vmatmul.bf16.gmra.mxu0 %v1313
        %v1324 = vpop.f32.mrf.mxu0
        %v1325 = vadd.f32 %v1298, %v1324
        %v1326 = vpop.f32.mrf.mxu0
        %1327 = vdwg.mxu0
        %v1328 = vmul.f32 %v1325, 0.5
        %v1329 = vmul.f32 %v1325, 0.044715
        %v1330 = vmul.f32 %v1329, %v1325
        %v1331 = vmul.f32 %v1330, %v1325
        %v1332 = vadd.f32 %v1325, %v1331
        %v1333 = vmul.f32 %v1332, 0.7978846
        %v1334 = vtanh.pop %v1333
        %v1335 = vadd.f32 %v1334, 1.0
        %v1336 = vmul.f32 %v1328, %v1335
        %v1337 = vpack.c.bf16 %v1336, %v1336
        %v1338 = vld [vmem:[%s798] sm:$0xf]
        %v1339 = vld [vmem:[%s798 + $0x4] sm:$0xf]
        %v1340 = vld [vmem:[%s798 + $0x8] sm:$0xf]
        %v1341 = vld [vmem:[%s798 + $0xc] sm:$0xf]
        %v1342 = vld [vmem:[%s798 + $0x10] sm:$0xf]
        %v1343 = vld [vmem:[%s798 + $0x14] sm:$0xf]
        %v1344 = vld [vmem:[%s798 + $0x18] sm:$0xf]
        %v1345 = vld [vmem:[%s798 + $0x1c] sm:$0xf]
        %v1346 = vld [vmem:[%s798 + $0x20] sm:$0xf]
        %v1347 = vld [vmem:[%s798 + $0x24] sm:$0xf]
        %v1348 = vld [vmem:[%s798 + $0x28] sm:$0xf]
        %v1349 = vld [vmem:[%s798 + $0x2c] sm:$0xf]
        %v1350 = vld [vmem:[%s798 + $0x30] sm:$0xf]
        %v1351 = vld [vmem:[%s798 + $0x34] sm:$0xf]
        %v1352 = vld [vmem:[%s798 + $0x38] sm:$0xf]
        %v1353 = vld [vmem:[%s798 + $0x3c] sm:$0xf]
        %v1354 = vld [vmem:[%s801] sm:$0x1]
        %v1356 = vperm.slane %v1354, 0
        %v1374 = vunpack.c.l.b16 %v1338
        %v1375 = vunpack.c.l.b16 %v1339
        %v1376 = vunpack.c.l.b16 %v1340
        %v1377 = vunpack.c.l.b16 %v1341
        %v1378 = vunpack.c.l.b16 %v1342
        %v1379 = vunpack.c.l.b16 %v1343
        %v1380 = vunpack.c.l.b16 %v1344
        %v1381 = vunpack.c.l.b16 %v1345
        %v1382 = vunpack.c.l.b16 %v1346
        %v1383 = vunpack.c.l.b16 %v1347
        %v1384 = vunpack.c.l.b16 %v1348
        %v1385 = vunpack.c.l.b16 %v1349
        %v1386 = vunpack.c.l.b16 %v1350
        %v1387 = vunpack.c.l.b16 %v1351
        %v1388 = vunpack.c.l.b16 %v1352
        %v1389 = vunpack.c.l.b16 %v1353
        %v1390 = vpack.c.b16 %v1375, %v1374
        %v1391 = vpack.c.b16 %v1377, %v1376
        %v1392 = vpack.c.b16 %v1379, %v1378
        %v1393 = vpack.c.b16 %v1381, %v1380
        %v1394 = vpack.c.b16 %v1383, %v1382
        %v1395 = vpack.c.b16 %v1385, %v1384
        %v1396 = vpack.c.b16 %v1387, %v1386
        %v1397 = vpack.c.b16 %v1389, %v1388
        %1406 = vmatpush.bf16.msra.mxu0 %v1397
        %1407 = vmatpush.bf16.msra.mxu0 %v1396
        %1408 = vmatpush.bf16.msra.mxu0 %v1395
        %1409 = vmatpush.bf16.msra.mxu0 %v1394
        %1410 = vmatpush.bf16.msra.mxu0 %v1393
        %1411 = vmatpush.bf16.msra.mxu0 %v1392
        %1412 = vmatpush.bf16.msra.mxu0 %v1391
        %1413 = vmatpush.bf16.msra.mxu0 %v1390
        %1414 = vmatmul.bf16.gmra.mxu0 %v1337
        %v1415 = vpop.f32.mrf.mxu0
        %v1416 = vadd.f32 %v1356, %v1415
        %v1417 = vpop.f32.mrf.mxu0
        %1418 = vdwg.mxu0
        %v1419 = vadd.f32 %v1290, %v1416
        %1420 = vst.msk [vmem:[#allocation2] sm:$0xff] %vm898, %v1419
        %p1421 = scmp.eq.s32.totalorder %s38, 2
        // Predicated region
        $region101: #{tpu_custom_call.1} parent=95 // pred_check
          %p1422 = pneg %p1421
        $region102: #{tpu_custom_call.1} parent=95 // pred_check_branch
          %1424 = sbr.rel (%p1422) target = $region104
        $region103: #{tpu_custom_call.1} parent=95 // pred_region
          %v1425 = vld [vmem:[#allocation2] sm:$0xff]
          %v1426 = vld [vmem:[%s15] sm:$0x1]
          %v1427 = vld [vmem:[%s16] sm:$0x1]
          %v1428 = vsel %vm898, %v1425, 0.0
          %1429 = vadd.xlane.f32.xlu0 %v1428
          %v1430 = vpop.xlane.xlu0 %1429
          %v1431 = vmul.f32 %v1430, %v908
          %v1432 = vsub.f32 %v1425, %v1431
          %v1433 = vmul.f32 %v1432, %v1432
          %v1434 = vsel %vm898, %v1433, 0.0
          %1435 = vadd.xlane.f32.xlu0 %v1434
          %v1436 = vpop.xlane.xlu0 %1435
          %v1437 = vmul.f32 %v1436, %v908
          %v1438 = vadd.f32 %v1437, 1e-05
          %v1439 = vrsqrt.pop %v1438
          %v1440 = vmul.f32 %v1439, %v1438
          %v1441 = vmul.f32 %v1440, %v1439
          %v1442 = vmul.f32 0.5, %v1441
          %v1443 = vsub.f32 1.5, %v1442
          %v1444 = vmul.f32 %v1439, %v1443
          %vm1445 = vweird.f32 %v1438
          %vm1446 = vweird.f32 %v1439
          %vm1447 = vmor %vm1445, %vm1446
          %v1448 = vsel %vm1447, %v1439, %v1444
          %v1449 = vmul.f32 %v1432, %v1448
          %v1451 = vperm.slane %v1426, 0
          %v1453 = vmul.f32 %v1449, %v1451
          %v1455 = vperm.slane %v1427, 0
          %v1457 = vadd.f32 %v1453, %v1455
          %v1458 = vpack.c.bf16 %v1457, %v1457
          %v1459 = vld [vmem:[%s17] sm:$0xf]
          %v1460 = vld [vmem:[%s17 + $0x4] sm:$0xf]
          %v1461 = vld [vmem:[%s17 + $0x8] sm:$0xf]
          %v1462 = vld [vmem:[%s17 + $0xc] sm:$0xf]
          %v1463 = vld [vmem:[%s18] sm:$0x1]
          %v1465 = vperm.slane %v1463, 0
          %v1471 = vunpack.c.l.b16 %v1459
          %v1472 = vunpack.c.l.b16 %v1460
          %v1473 = vunpack.c.l.b16 %v1461
          %v1474 = vunpack.c.l.b16 %v1462
          %v1475 = vpack.c.b16 %v1472, %v1471
          %v1476 = vpack.c.b16 %v1474, %v1473
          %v1480 = vsel %vm898, %v1458, 0
          %1482 = vmatpush.bf16.msra.mxu0 0
          %1483 = vmatpush.bf16.msra.mxu0 0
          %1484 = vmatpush.bf16.msra.mxu0 0
          %1485 = vmatpush.bf16.msra.mxu0 0
          %1486 = vmatpush.bf16.msra.mxu0 0
          %1487 = vmatpush.bf16.msra.mxu0 0
          %1488 = vmatpush.bf16.msra.mxu0 %v1476
          %1489 = vmatpush.bf16.msra.mxu0 %v1475
          %1490 = vmatmul.bf16.gmra.mxu0 %v1480
          %v1491 = vpop.f32.mrf.mxu0
          %v1492 = vadd.f32 %v1465, %v1491
          %v1493 = vpop.f32.mrf.mxu0
          %1494 = vdwg.mxu0
          %1495 = vst [vmem:[%s753] sm:$0xff] %v1492
        $region104: #{tpu_custom_call.1} parent=95 // pred_fallthru
          _
        %s1496 = sand.u32 %s517, 1
        %s1497 = scalar_lea.sflag [#allocation5], %s1496
        %s1498 = sand.u32 %s517, 1
        %s1499 = smul.addr %s1498, 8
        %s1500 = scalar_lea.vmem [#allocation4], %s1499
        // Predicated region
        $region105: #{tpu_custom_call.1} parent=95 // pred_check
          %p1501 = pneg %p527
        $region106: #{tpu_custom_call.1} parent=95 // pred_check_branch
          %1503 = sbr.rel (%p1501) target = $region108
        $region107: #{tpu_custom_call.1} parent=95 // pred_region
          %1505 = vsyncadd %s1497, 0
          %s1506 = smul.addr %s37, 8
          %s1507 = scalar_lea.hbm %s19, %s1506
          %s1509 = sshll.u32 %s1500, 4
          %s1510 = int_to_ptr.vmem [resolvable:$true] %s1509
          %s1511 = sshll.u32 %s1507, 4
          %s1512 = int_to_ptr.hbm [resolvable:$true] %s1511
          %1514 = dma.vmem_to_hbm [thread:$0]  %s1510, 128, %s1512, %s1497
        $region108: #{tpu_custom_call.1} parent=95 // pred_fallthru
          _
      $region96: #{tpu_custom_call.1} parent=5 // pred_fallthru
        _
      %p1515 = scmp.le.s32.totalorder 2, %s28
      // Predicated region
      $region109: #{tpu_custom_call.1} parent=5 // pred_check
        %p1516 = pneg %p1515
      $region110: #{tpu_custom_call.1} parent=5 // pred_check_branch
        %1518 = sbr.rel (%p1516) target = $region112
      $region111: #{tpu_custom_call.1} parent=5 // pred_region
        %s1519 = ssub.s32 %s28, 2
        // Predicated region
        $region113: #{tpu_custom_call.1} parent=111 // pred_check
          %p1520 = pneg %p533
        $region114: #{tpu_custom_call.1} parent=111 // pred_check_branch
          %1522 = sbr.rel (%p1520) target = $region116
        $region115: #{tpu_custom_call.1} parent=111 // pred_region
          %s1523 = sand.u32 %s518, 1
          %s1524 = scalar_lea.sflag [#allocation5], %s1523
          %s1525 = sand.u32 %s518, 1
          %s1526 = smul.addr %s1525, 8
          %s1527 = scalar_lea.vmem [#allocation4], %s1526
          %1529 = dma.done %s1524, 128
        $region116: #{tpu_custom_call.1} parent=111 // pred_fallthru
          _
      $region112: #{tpu_custom_call.1} parent=5 // pred_fallthru
        _
    $region6: #{tpu_custom_call.1} parent=1 // loop_footer
      %s32 = sadd.s32 1, %s28
    $region7: #{tpu_custom_call.1} parent=1 // loop_footer_branch
      %27 = sbr.rel target = $region3
    $region8: #{tpu_custom_call.1} parent=1 // loop_exit
      _
    %1530 = vsyncpa [#allocation5], 1
    %s1531 = scalar_lea.sflag [#allocation5], 1
    %1532 = vsyncpa %s1531, 1

</llo_original>
